<compile_context>
chip_gen: v7x
topology: tpu7x:2x2x1
jax: 0.10.0
libtpu: 0.0.40
codegen_flags: <defaults>
</compile_context>

<pallas_src>
import functools

import jax
import jax.numpy as jnp
from jax.experimental import pallas as pl
from jax.experimental.pallas import tpu as pltpu

EPS = 1e-5
NEG_SLOPE = 0.1


def _conv_image(x_ref, w_ref, *, stride, oh, ow):
    """Direct 9-tap conv of one image block, all patches built in VMEM.

    x_ref: [1, Hp, s, C_in, RW] bf16  (width-phase-split, spatially padded input)
    w_ref: [C_out, 9*C_in]      bf16
    returns [C_out, OH*OW] float32 (channel-major, spatial on lanes).
    """
    rows = []
    for r in range(oh):
        pieces = []
        for kh in range(3):
            for kw in range(3):
                q, dc = kw % stride, kw // stride
                # [C_in, OW] window for tap (kh, kw); every index is static.
                pieces.append(x_ref[0, stride * r + kh, q, :, dc:dc + ow])
        x_row = jnp.concatenate(pieces, axis=0)                   # [9*C_in, OW]
        rows.append(jnp.dot(w_ref[...], x_row,
                            preferred_element_type=jnp.float32))  # [C_out, OW]
    return jnp.concatenate(rows, axis=1)                          # [C_out, OH*OW]


def _stats_kernel(x_ref, w_ref, stats_ref, *, stride, oh, ow):
    # stats_ref: [1, C_out, 2] f32, resident accumulator across the image axis.
    @pl.when(pl.program_id(1) == 0)
    def _():
        stats_ref[...] = jnp.zeros_like(stats_ref)

    y = _conv_image(x_ref, w_ref, stride=stride, oh=oh, ow=ow)     # [C_out, OH*OW]
    stats_ref[0, :, 0:1] += jnp.sum(y, axis=1, keepdims=True)      # per-channel sum
    stats_ref[0, :, 1:2] += jnp.sum(y * y, axis=1, keepdims=True)  # per-channel sumsq


def _apply_kernel(x_ref, w_ref, ss_ref, o_ref, *, stride, oh, ow):
    # Recompute the (cheap) conv and fuse BN scale/shift + LeakyReLU.
    y = _conv_image(x_ref, w_ref, stride=stride, oh=oh, ow=ow)     # [C_out, OH*OW]
    y = y * ss_ref[:, 0:1] + ss_ref[:, 1:2]
    o_ref[0, :, :] = jnp.where(y >= 0, y, NEG_SLOPE * y).astype(o_ref.dtype)


def _prep_input(x_nchw, stride):
    """Pad + width-phase-split the input: [N,C,H,W] -> [N, H+2, s, C, RW] bf16.

    Column c (padded coords) maps to (phase q=c%s, index j=c//s); the kernel then
    reads tap (kh,kw) for output (r,ow) at [r*s+kh, kw%s, :, kw//s + ow] -- all
    unit-stride, static slices (no strided lane gathers in-kernel).
    """
    n, c_in, h, w = x_nchw.shape
    s = stride
    oh = (h + 2 - 3) // s + 1
    ow = (w + 2 - 3) // s + 1
    rw = ow + 2 // s
    hp = h + 2
    wt = s * rw
    pad_r = max(0, wt - (w + 1))
    xp = jnp.pad(x_nchw, ((0, 0), (0, 0), (1, 1), (1, pad_r)))[:, :, :, :wt]
    xw = xp.reshape(n, c_in, hp, rw, s).transpose(0, 2, 4, 1, 3)   # [N, Hp, s, C, RW]
    return xw.astype(jnp.bfloat16), oh, ow, rw, hp


def convlayer_forward(x_nchw, w_oihw, bias, gamma, beta, stride):
    """Forward of the PyTorch convlayer (BN in training mode, batch statistics)."""
    # Conv bias cancels exactly under training-mode BatchNorm (mean subtraction).
    del bias
    n, c_in, h, w = x_nchw.shape
    c_out = w_oihw.shape[0]
    s = int(stride)

    xw, oh, ow, rw, hp = _prep_input(x_nchw.astype(jnp.float32), s)
    k9 = 9 * c_in

    # [C_out, C_in, 3, 3] -> [C_out, 3, 3, C_in] -> [C_out, 9*C_in]; matches the
    # (kh, kw, ci) order of the in-kernel patch rows.
    w_mat = jnp.transpose(w_oihw, (0, 2, 3, 1)).reshape(c_out, k9).astype(jnp.bfloat16)

    x_spec_block = (1, hp, s, c_in, rw)
    w_spec = pl.BlockSpec((c_out, k9), lambda *idx: (0, 0))

    # ---- Pass 1: per-channel sum / sum-of-squares of the conv output -----------
    # Leading "parallel" axis of size 2 (when N is even) keeps both v7x cores busy;
    # per-core partial stats are summed in the wrapper.
    g_cores = 2 if (n % 2 == 0 and n >= 2) else 1
    ng = n // g_cores

    stats = pl.pallas_call(
        functools.partial(_stats_kernel, stride=s, oh=oh, ow=ow),
        out_shape=jax.ShapeDtypeStruct((g_cores, c_out, 2), jnp.float32),
        grid=(g_cores, ng),
        in_specs=[
            pl.BlockSpec(x_spec_block, lambda g, i: (g * ng + i, 0, 0, 0, 0)),
            w_spec,
        ],
        out_specs=pl.BlockSpec((1, c_out, 2), lambda g, i: (g, 0, 0)),
        compiler_params=pltpu.CompilerParams(
            dimension_semantics=("parallel", "arbitrary"),
            vmem_limit_bytes=32 * 1024 * 1024),
    )(xw, w_mat)

    # ---- Fold batch stats + affine into per-channel scale/shift (tiny f32 op) --
    stats_sum = jnp.sum(stats, axis=0)                     # [C_out, 2]
    count = n * oh * ow
    mean = stats_sum[:, 0] / count
    var = jnp.maximum(stats_sum[:, 1] / count - mean * mean, 0.0)  # biased batch var
    inv_std = jax.lax.rsqrt(var + EPS)
    scale = gamma.astype(jnp.float32) * inv_std
    shift = beta.astype(jnp.float32) - mean * scale
    ss = jnp.stack([scale, shift], axis=1)                 # [C_out, 2] f32

    # ---- Pass 2: conv (recomputed) + BN scale/shift + LeakyReLU, channel-major --
    out = pl.pallas_call(
        functools.partial(_apply_kernel, stride=s, oh=oh, ow=ow),
        out_shape=jax.ShapeDtypeStruct((n, c_out, oh * ow), jnp.float32),
        grid=(n,),
        in_specs=[
            pl.BlockSpec(x_spec_block, lambda i: (i, 0, 0, 0, 0)),
            w_spec,
            pl.BlockSpec((c_out, 2), lambda i: (0, 0)),
        ],
        out_specs=pl.BlockSpec((1, c_out, oh * ow), lambda i: (i, 0, 0)),
        compiler_params=pltpu.CompilerParams(
            dimension_semantics=("parallel",),
            vmem_limit_bytes=32 * 1024 * 1024),
    )(xw, w_mat, ss)

    # Pure reshape -- the output is already NCHW channel-major; no transpose.
    return out.reshape(n, c_out, oh, ow)


def _reference(x, w, b, gamma, beta, stride):
    """Pure-JAX f32 reference of the PyTorch module forward (train-mode BN)."""
    y = jax.lax.conv_general_dilated(
        x, w, window_strides=(stride, stride), padding=((1, 1), (1, 1)),
        dimension_numbers=("NCHW", "OIHW", "NCHW"))
    y = y + b.reshape(1, -1, 1, 1)
    mean = jnp.mean(y, axis=(0, 2, 3), keepdims=True)
    var = jnp.mean((y - mean) ** 2, axis=(0, 2, 3), keepdims=True)
    y = (y - mean) * jax.lax.rsqrt(var + EPS)
    y = y * gamma.reshape(1, -1, 1, 1) + beta.reshape(1, -1, 1, 1)
    return jnp.where(y >= 0, y, NEG_SLOPE * y)


if __name__ == "__main__":
    key = jax.random.PRNGKey(0)
    k_x, k_w, k_b = jax.random.split(key, 3)

    # small shapes consistent with the module: in_nc=4, out_nc=8, stride=2
    N, C_IN, H, W = 2, 4, 16, 16
    C_OUT, STRIDE = 8, 2

    x = jax.random.normal(k_x, (N, C_IN, H, W), dtype=jnp.float32)

    fan_in = C_IN * 3 * 3
    w_conv = jax.random.normal(k_w, (C_OUT, C_IN, 3, 3), dtype=jnp.float32) / jnp.sqrt(fan_in)
    b_conv = jax.random.normal(k_b, (C_OUT,), dtype=jnp.float32) * 0.01
    gamma = jnp.ones((C_OUT,), dtype=jnp.float32)
    beta = jnp.zeros((C_OUT,), dtype=jnp.float32)

    y = convlayer_forward(x, w_conv, b_conv, gamma, beta, STRIDE)
    jax.block_until_ready(y)
    assert y.shape == (N, C_OUT, H // STRIDE, W // STRIDE), y.shape

    y_ref = _reference(x, w_conv, b_conv, gamma, beta, STRIDE)
    err = float(jnp.max(jnp.abs(y - y_ref)))
    assert err < 5e-2, f"max abs err {err}"

    print("KERNEL_OK")
</pallas_src>

<mosaic_0001>
module attributes {stable_mosaic.version = 11 : i64} {
  func.func @_stats_kernel(%arg0: i32, %arg1: i32, %arg2: memref<1x18x2x4x9xbf16, #tpu.memory_space<vmem>>, %arg3: memref<8x36xbf16, #tpu.memory_space<vmem>>, %arg4: memref<1x8x2xf32, #tpu.memory_space<vmem>>) attributes {dimension_semantics = [#tpu.dimension_semantics<parallel>, #tpu.dimension_semantics<arbitrary>], iteration_bounds = array<i64: 2, 1>, scalar_prefetch = 0 : i64, scratch_operands = 0 : i64, tpu.core_type = #tpu.core_type<tc>, window_params = [{transform_indices = @transform_0, window_bounds = array<i64: 1, 18, 2, 4, 9>}, {pipeline_mode = #tpu.pipeline_mode<synchronous>, transform_indices = @transform_1, window_bounds = array<i64: 8, 36>}, {transform_indices = @transform_2, window_bounds = array<i64: 1, 8, 2>}]} {
    %c0_i32 = arith.constant 0 : i32
    %0 = arith.cmpi eq, %arg1, %c0_i32 : i32
    %1 = arith.extui %0 : i1 to i32
    %c0_i32_0 = arith.constant 0 : i32
    %2 = arith.cmpi ne, %1, %c0_i32_0 : i32
    scf.if %2 {
      %cst_381 = arith.constant 0.000000e+00 : f32
      %189 = vector.broadcast %cst_381 : f32 to vector<1x8x2xf32>
      %c0_382 = arith.constant 0 : index
      %c0_383 = arith.constant 0 : index
      %c0_384 = arith.constant 0 : index
      %190 = vector.load %arg4[%c0_382, %c0_383, %c0_384] : memref<1x8x2xf32, #tpu.memory_space<vmem>>, vector<1x8x2xf32>
      tpu.vector_store %arg4[%c0_382, %c0_383, %c0_384], %189 {strides = array<i32>} : memref<1x8x2xf32, #tpu.memory_space<vmem>>, vector<1x8x2xf32>,
    } else {
    }
    %c0 = arith.constant 0 : index
    %c0_1 = arith.constant 0 : index
    %c0_2 = arith.constant 0 : index
    %c0_3 = arith.constant 0 : index
    %c0_4 = arith.constant 0 : index
    %3 = vector.load %arg2[%c0, %c0_1, %c0_2, %c0_3, %c0_4] : memref<1x18x2x4x9xbf16, #tpu.memory_space<vmem>>, vector<1x1x1x4x8xbf16>
    %4 = vector.shape_cast %3 : vector<1x1x1x4x8xbf16> to vector<4x8xbf16>
    %c0_5 = arith.constant 0 : index
    %c0_6 = arith.constant 0 : index
    %c1 = arith.constant 1 : index
    %c0_7 = arith.constant 0 : index
    %c0_8 = arith.constant 0 : index
    %5 = vector.load %arg2[%c0_5, %c0_6, %c1, %c0_7, %c0_8] : memref<1x18x2x4x9xbf16, #tpu.memory_space<vmem>>, vector<1x1x1x4x8xbf16>
    %6 = vector.shape_cast %5 : vector<1x1x1x4x8xbf16> to vector<4x8xbf16>
    %c0_9 = arith.constant 0 : index
    %c0_10 = arith.constant 0 : index
    %c0_11 = arith.constant 0 : index
    %c0_12 = arith.constant 0 : index
    %c1_13 = arith.constant 1 : index
    %7 = vector.load %arg2[%c0_9, %c0_10, %c0_11, %c0_12, %c1_13] : memref<1x18x2x4x9xbf16, #tpu.memory_space<vmem>>, vector<1x1x1x4x8xbf16>
    %8 = vector.shape_cast %7 : vector<1x1x1x4x8xbf16> to vector<4x8xbf16>
    %c0_14 = arith.constant 0 : index
    %c1_15 = arith.constant 1 : index
    %c0_16 = arith.constant 0 : index
    %c0_17 = arith.constant 0 : index
    %c0_18 = arith.constant 0 : index
    %9 = vector.load %arg2[%c0_14, %c1_15, %c0_16, %c0_17, %c0_18] : memref<1x18x2x4x9xbf16, #tpu.memory_space<vmem>>, vector<1x1x1x4x8xbf16>
    %10 = vector.shape_cast %9 : vector<1x1x1x4x8xbf16> to vector<4x8xbf16>
    %c0_19 = arith.constant 0 : index
    %c1_20 = arith.constant 1 : index
    %c1_21 = arith.constant 1 : index
    %c0_22 = arith.constant 0 : index
    %c0_23 = arith.constant 0 : index
    %11 = vector.load %arg2[%c0_19, %c1_20, %c1_21, %c0_22, %c0_23] : memref<1x18x2x4x9xbf16, #tpu.memory_space<vmem>>, vector<1x1x1x4x8xbf16>
    %12 = vector.shape_cast %11 : vector<1x1x1x4x8xbf16> to vector<4x8xbf16>
    %c0_24 = arith.constant 0 : index
    %c1_25 = arith.constant 1 : index
    %c0_26 = arith.constant 0 : index
    %c0_27 = arith.constant 0 : index
    %c1_28 = arith.constant 1 : index
    %13 = vector.load %arg2[%c0_24, %c1_25, %c0_26, %c0_27, %c1_28] : memref<1x18x2x4x9xbf16, #tpu.memory_space<vmem>>, vector<1x1x1x4x8xbf16>
    %14 = vector.shape_cast %13 : vector<1x1x1x4x8xbf16> to vector<4x8xbf16>
    %c0_29 = arith.constant 0 : index
    %c2 = arith.constant 2 : index
    %c0_30 = arith.constant 0 : index
    %c0_31 = arith.constant 0 : index
    %c0_32 = arith.constant 0 : index
    %15 = vector.load %arg2[%c0_29, %c2, %c0_30, %c0_31, %c0_32] : memref<1x18x2x4x9xbf16, #tpu.memory_space<vmem>>, vector<1x1x1x4x8xbf16>
    %16 = vector.shape_cast %15 : vector<1x1x1x4x8xbf16> to vector<4x8xbf16>
    %c0_33 = arith.constant 0 : index
    %c2_34 = arith.constant 2 : index
    %c1_35 = arith.constant 1 : index
    %c0_36 = arith.constant 0 : index
    %c0_37 = arith.constant 0 : index
    %17 = vector.load %arg2[%c0_33, %c2_34, %c1_35, %c0_36, %c0_37] : memref<1x18x2x4x9xbf16, #tpu.memory_space<vmem>>, vector<1x1x1x4x8xbf16>
    %18 = vector.shape_cast %17 : vector<1x1x1x4x8xbf16> to vector<4x8xbf16>
    %c0_38 = arith.constant 0 : index
    %c2_39 = arith.constant 2 : index
    %c0_40 = arith.constant 0 : index
    %c0_41 = arith.constant 0 : index
    %c1_42 = arith.constant 1 : index
    %19 = vector.load %arg2[%c0_38, %c2_39, %c0_40, %c0_41, %c1_42] : memref<1x18x2x4x9xbf16, #tpu.memory_space<vmem>>, vector<1x1x1x4x8xbf16>
    %20 = vector.shape_cast %19 : vector<1x1x1x4x8xbf16> to vector<4x8xbf16>
    %21 = tpu.concatenate %4, %6, %8, %10, %12, %14, %16, %18, %20 in 0 : vector<4x8xbf16>, vector<4x8xbf16>, vector<4x8xbf16>, vector<4x8xbf16>, vector<4x8xbf16>, vector<4x8xbf16>, vector<4x8xbf16>, vector<4x8xbf16>, vector<4x8xbf16> -> vector<36x8xbf16>
    %c0_43 = arith.constant 0 : index
    %c0_44 = arith.constant 0 : index
    %22 = vector.load %arg3[%c0_43, %c0_44] : memref<8x36xbf16, #tpu.memory_space<vmem>>, vector<8x36xbf16>
    %cst = arith.constant dense<0.000000e+00> : vector<8x8xf32>
    %23 = tpu.matmul %22, %21, %cst {dimension_numbers = #tpu.dot_dimension_numbers<[1], [0], [0], [1], [0, 0, 1, 1], [], []>} : vector<8x36xbf16>, vector<36x8xbf16>, vector<8x8xf32> -> vector<8x8xf32>
    %c0_45 = arith.constant 0 : index
    %c2_46 = arith.constant 2 : index
    %c0_47 = arith.constant 0 : index
    %c0_48 = arith.constant 0 : index
    %c0_49 = arith.constant 0 : index
    %24 = vector.load %arg2[%c0_45, %c2_46, %c0_47, %c0_48, %c0_49] : memref<1x18x2x4x9xbf16, #tpu.memory_space<vmem>>, vector<1x1x1x4x8xbf16>
    %25 = vector.shape_cast %24 : vector<1x1x1x4x8xbf16> to vector<4x8xbf16>
    %c0_50 = arith.constant 0 : index
    %c2_51 = arith.constant 2 : index
    %c1_52 = arith.constant 1 : index
    %c0_53 = arith.constant 0 : index
    %c0_54 = arith.constant 0 : index
    %26 = vector.load %arg2[%c0_50, %c2_51, %c1_52, %c0_53, %c0_54] : memref<1x18x2x4x9xbf16, #tpu.memory_space<vmem>>, vector<1x1x1x4x8xbf16>
    %27 = vector.shape_cast %26 : vector<1x1x1x4x8xbf16> to vector<4x8xbf16>
    %c0_55 = arith.constant 0 : index
    %c2_56 = arith.constant 2 : index
    %c0_57 = arith.constant 0 : index
    %c0_58 = arith.constant 0 : index
    %c1_59 = arith.constant 1 : index
    %28 = vector.load %arg2[%c0_55, %c2_56, %c0_57, %c0_58, %c1_59] : memref<1x18x2x4x9xbf16, #tpu.memory_space<vmem>>, vector<1x1x1x4x8xbf16>
    %29 = vector.shape_cast %28 : vector<1x1x1x4x8xbf16> to vector<4x8xbf16>
    %c0_60 = arith.constant 0 : index
    %c3 = arith.constant 3 : index
    %c0_61 = arith.constant 0 : index
    %c0_62 = arith.constant 0 : index
    %c0_63 = arith.constant 0 : index
    %30 = vector.load %arg2[%c0_60, %c3, %c0_61, %c0_62, %c0_63] : memref<1x18x2x4x9xbf16, #tpu.memory_space<vmem>>, vector<1x1x1x4x8xbf16>
    %31 = vector.shape_cast %30 : vector<1x1x1x4x8xbf16> to vector<4x8xbf16>
    %c0_64 = arith.constant 0 : index
    %c3_65 = arith.constant 3 : index
    %c1_66 = arith.constant 1 : index
    %c0_67 = arith.constant 0 : index
    %c0_68 = arith.constant 0 : index
    %32 = vector.load %arg2[%c0_64, %c3_65, %c1_66, %c0_67, %c0_68] : memref<1x18x2x4x9xbf16, #tpu.memory_space<vmem>>, vector<1x1x1x4x8xbf16>
    %33 = vector.shape_cast %32 : vector<1x1x1x4x8xbf16> to vector<4x8xbf16>
    %c0_69 = arith.constant 0 : index
    %c3_70 = arith.constant 3 : index
    %c0_71 = arith.constant 0 : index
    %c0_72 = arith.constant 0 : index
    %c1_73 = arith.constant 1 : index
    %34 = vector.load %arg2[%c0_69, %c3_70, %c0_71, %c0_72, %c1_73] : memref<1x18x2x4x9xbf16, #tpu.memory_space<vmem>>, vector<1x1x1x4x8xbf16>
    %35 = vector.shape_cast %34 : vector<1x1x1x4x8xbf16> to vector<4x8xbf16>
    %c0_74 = arith.constant 0 : index
    %c4 = arith.constant 4 : index
    %c0_75 = arith.constant 0 : index
    %c0_76 = arith.constant 0 : index
    %c0_77 = arith.constant 0 : index
    %36 = vector.load %arg2[%c0_74, %c4, %c0_75, %c0_76, %c0_77] : memref<1x18x2x4x9xbf16, #tpu.memory_space<vmem>>, vector<1x1x1x4x8xbf16>
    %37 = vector.shape_cast %36 : vector<1x1x1x4x8xbf16> to vector<4x8xbf16>
    %c0_78 = arith.constant 0 : index
    %c4_79 = arith.constant 4 : index
    %c1_80 = arith.constant 1 : index
    %c0_81 = arith.constant 0 : index
    %c0_82 = arith.constant 0 : index
    %38 = vector.load %arg2[%c0_78, %c4_79, %c1_80, %c0_81, %c0_82] : memref<1x18x2x4x9xbf16, #tpu.memory_space<vmem>>, vector<1x1x1x4x8xbf16>
    %39 = vector.shape_cast %38 : vector<1x1x1x4x8xbf16> to vector<4x8xbf16>
    %c0_83 = arith.constant 0 : index
    %c4_84 = arith.constant 4 : index
    %c0_85 = arith.constant 0 : index
    %c0_86 = arith.constant 0 : index
    %c1_87 = arith.constant 1 : index
    %40 = vector.load %arg2[%c0_83, %c4_84, %c0_85, %c0_86, %c1_87] : memref<1x18x2x4x9xbf16, #tpu.memory_space<vmem>>, vector<1x1x1x4x8xbf16>
    %41 = vector.shape_cast %40 : vector<1x1x1x4x8xbf16> to vector<4x8xbf16>
    %42 = tpu.concatenate %25, %27, %29, %31, %33, %35, %37, %39, %41 in 0 : vector<4x8xbf16>, vector<4x8xbf16>, vector<4x8xbf16>, vector<4x8xbf16>, vector<4x8xbf16>, vector<4x8xbf16>, vector<4x8xbf16>, vector<4x8xbf16>, vector<4x8xbf16> -> vector<36x8xbf16>
    %c0_88 = arith.constant 0 : index
    %c0_89 = arith.constant 0 : index
    %43 = vector.load %arg3[%c0_88, %c0_89] : memref<8x36xbf16, #tpu.memory_space<vmem>>, vector<8x36xbf16>
    %cst_90 = arith.constant dense<0.000000e+00> : vector<8x8xf32>
    %44 = tpu.matmul %43, %42, %cst_90 {dimension_numbers = #tpu.dot_dimension_numbers<[1], [0], [0], [1], [0, 0, 1, 1], [], []>} : vector<8x36xbf16>, vector<36x8xbf16>, vector<8x8xf32> -> vector<8x8xf32>
    %c0_91 = arith.constant 0 : index
    %c4_92 = arith.constant 4 : index
    %c0_93 = arith.constant 0 : index
    %c0_94 = arith.constant 0 : index
    %c0_95 = arith.constant 0 : index
    %45 = vector.load %arg2[%c0_91, %c4_92, %c0_93, %c0_94, %c0_95] : memref<1x18x2x4x9xbf16, #tpu.memory_space<vmem>>, vector<1x1x1x4x8xbf16>
    %46 = vector.shape_cast %45 : vector<1x1x1x4x8xbf16> to vector<4x8xbf16>
    %c0_96 = arith.constant 0 : index
    %c4_97 = arith.constant 4 : index
    %c1_98 = arith.constant 1 : index
    %c0_99 = arith.constant 0 : index
    %c0_100 = arith.constant 0 : index
    %47 = vector.load %arg2[%c0_96, %c4_97, %c1_98, %c0_99, %c0_100] : memref<1x18x2x4x9xbf16, #tpu.memory_space<vmem>>, vector<1x1x1x4x8xbf16>
    %48 = vector.shape_cast %47 : vector<1x1x1x4x8xbf16> to vector<4x8xbf16>
    %c0_101 = arith.constant 0 : index
    %c4_102 = arith.constant 4 : index
    %c0_103 = arith.constant 0 : index
    %c0_104 = arith.constant 0 : index
    %c1_105 = arith.constant 1 : index
    %49 = vector.load %arg2[%c0_101, %c4_102, %c0_103, %c0_104, %c1_105] : memref<1x18x2x4x9xbf16, #tpu.memory_space<vmem>>, vector<1x1x1x4x8xbf16>
    %50 = vector.shape_cast %49 : vector<1x1x1x4x8xbf16> to vector<4x8xbf16>
    %c0_106 = arith.constant 0 : index
    %c5 = arith.constant 5 : index
    %c0_107 = arith.constant 0 : index
    %c0_108 = arith.constant 0 : index
    %c0_109 = arith.constant 0 : index
    %51 = vector.load %arg2[%c0_106, %c5, %c0_107, %c0_108, %c0_109] : memref<1x18x2x4x9xbf16, #tpu.memory_space<vmem>>, vector<1x1x1x4x8xbf16>
    %52 = vector.shape_cast %51 : vector<1x1x1x4x8xbf16> to vector<4x8xbf16>
    %c0_110 = arith.constant 0 : index
    %c5_111 = arith.constant 5 : index
    %c1_112 = arith.constant 1 : index
    %c0_113 = arith.constant 0 : index
    %c0_114 = arith.constant 0 : index
    %53 = vector.load %arg2[%c0_110, %c5_111, %c1_112, %c0_113, %c0_114] : memref<1x18x2x4x9xbf16, #tpu.memory_space<vmem>>, vector<1x1x1x4x8xbf16>
    %54 = vector.shape_cast %53 : vector<1x1x1x4x8xbf16> to vector<4x8xbf16>
    %c0_115 = arith.constant 0 : index
    %c5_116 = arith.constant 5 : index
    %c0_117 = arith.constant 0 : index
    %c0_118 = arith.constant 0 : index
    %c1_119 = arith.constant 1 : index
    %55 = vector.load %arg2[%c0_115, %c5_116, %c0_117, %c0_118, %c1_119] : memref<1x18x2x4x9xbf16, #tpu.memory_space<vmem>>, vector<1x1x1x4x8xbf16>
    %56 = vector.shape_cast %55 : vector<1x1x1x4x8xbf16> to vector<4x8xbf16>
    %c0_120 = arith.constant 0 : index
    %c6 = arith.constant 6 : index
    %c0_121 = arith.constant 0 : index
    %c0_122 = arith.constant 0 : index
    %c0_123 = arith.constant 0 : index
    %57 = vector.load %arg2[%c0_120, %c6, %c0_121, %c0_122, %c0_123] : memref<1x18x2x4x9xbf16, #tpu.memory_space<vmem>>, vector<1x1x1x4x8xbf16>
    %58 = vector.shape_cast %57 : vector<1x1x1x4x8xbf16> to vector<4x8xbf16>
    %c0_124 = arith.constant 0 : index
    %c6_125 = arith.constant 6 : index
    %c1_126 = arith.constant 1 : index
    %c0_127 = arith.constant 0 : index
    %c0_128 = arith.constant 0 : index
    %59 = vector.load %arg2[%c0_124, %c6_125, %c1_126, %c0_127, %c0_128] : memref<1x18x2x4x9xbf16, #tpu.memory_space<vmem>>, vector<1x1x1x4x8xbf16>
    %60 = vector.shape_cast %59 : vector<1x1x1x4x8xbf16> to vector<4x8xbf16>
    %c0_129 = arith.constant 0 : index
    %c6_130 = arith.constant 6 : index
    %c0_131 = arith.constant 0 : index
    %c0_132 = arith.constant 0 : index
    %c1_133 = arith.constant 1 : index
    %61 = vector.load %arg2[%c0_129, %c6_130, %c0_131, %c0_132, %c1_133] : memref<1x18x2x4x9xbf16, #tpu.memory_space<vmem>>, vector<1x1x1x4x8xbf16>
    %62 = vector.shape_cast %61 : vector<1x1x1x4x8xbf16> to vector<4x8xbf16>
    %63 = tpu.concatenate %46, %48, %50, %52, %54, %56, %58, %60, %62 in 0 : vector<4x8xbf16>, vector<4x8xbf16>, vector<4x8xbf16>, vector<4x8xbf16>, vector<4x8xbf16>, vector<4x8xbf16>, vector<4x8xbf16>, vector<4x8xbf16>, vector<4x8xbf16> -> vector<36x8xbf16>
    %c0_134 = arith.constant 0 : index
    %c0_135 = arith.constant 0 : index
    %64 = vector.load %arg3[%c0_134, %c0_135] : memref<8x36xbf16, #tpu.memory_space<vmem>>, vector<8x36xbf16>
    %cst_136 = arith.constant dense<0.000000e+00> : vector<8x8xf32>
    %65 = tpu.matmul %64, %63, %cst_136 {dimension_numbers = #tpu.dot_dimension_numbers<[1], [0], [0], [1], [0, 0, 1, 1], [], []>} : vector<8x36xbf16>, vector<36x8xbf16>, vector<8x8xf32> -> vector<8x8xf32>
    %c0_137 = arith.constant 0 : index
    %c6_138 = arith.constant 6 : index
    %c0_139 = arith.constant 0 : index
    %c0_140 = arith.constant 0 : index
    %c0_141 = arith.constant 0 : index
    %66 = vector.load %arg2[%c0_137, %c6_138, %c0_139, %c0_140, %c0_141] : memref<1x18x2x4x9xbf16, #tpu.memory_space<vmem>>, vector<1x1x1x4x8xbf16>
    %67 = vector.shape_cast %66 : vector<1x1x1x4x8xbf16> to vector<4x8xbf16>
    %c0_142 = arith.constant 0 : index
    %c6_143 = arith.constant 6 : index
    %c1_144 = arith.constant 1 : index
    %c0_145 = arith.constant 0 : index
    %c0_146 = arith.constant 0 : index
    %68 = vector.load %arg2[%c0_142, %c6_143, %c1_144, %c0_145, %c0_146] : memref<1x18x2x4x9xbf16, #tpu.memory_space<vmem>>, vector<1x1x1x4x8xbf16>
    %69 = vector.shape_cast %68 : vector<1x1x1x4x8xbf16> to vector<4x8xbf16>
    %c0_147 = arith.constant 0 : index
    %c6_148 = arith.constant 6 : index
    %c0_149 = arith.constant 0 : index
    %c0_150 = arith.constant 0 : index
    %c1_151 = arith.constant 1 : index
    %70 = vector.load %arg2[%c0_147, %c6_148, %c0_149, %c0_150, %c1_151] : memref<1x18x2x4x9xbf16, #tpu.memory_space<vmem>>, vector<1x1x1x4x8xbf16>
    %71 = vector.shape_cast %70 : vector<1x1x1x4x8xbf16> to vector<4x8xbf16>
    %c0_152 = arith.constant 0 : index
    %c7 = arith.constant 7 : index
    %c0_153 = arith.constant 0 : index
    %c0_154 = arith.constant 0 : index
    %c0_155 = arith.constant 0 : index
    %72 = vector.load %arg2[%c0_152, %c7, %c0_153, %c0_154, %c0_155] : memref<1x18x2x4x9xbf16, #tpu.memory_space<vmem>>, vector<1x1x1x4x8xbf16>
    %73 = vector.shape_cast %72 : vector<1x1x1x4x8xbf16> to vector<4x8xbf16>
    %c0_156 = arith.constant 0 : index
    %c7_157 = arith.constant 7 : index
    %c1_158 = arith.constant 1 : index
    %c0_159 = arith.constant 0 : index
    %c0_160 = arith.constant 0 : index
    %74 = vector.load %arg2[%c0_156, %c7_157, %c1_158, %c0_159, %c0_160] : memref<1x18x2x4x9xbf16, #tpu.memory_space<vmem>>, vector<1x1x1x4x8xbf16>
    %75 = vector.shape_cast %74 : vector<1x1x1x4x8xbf16> to vector<4x8xbf16>
    %c0_161 = arith.constant 0 : index
    %c7_162 = arith.constant 7 : index
    %c0_163 = arith.constant 0 : index
    %c0_164 = arith.constant 0 : index
    %c1_165 = arith.constant 1 : index
    %76 = vector.load %arg2[%c0_161, %c7_162, %c0_163, %c0_164, %c1_165] : memref<1x18x2x4x9xbf16, #tpu.memory_space<vmem>>, vector<1x1x1x4x8xbf16>
    %77 = vector.shape_cast %76 : vector<1x1x1x4x8xbf16> to vector<4x8xbf16>
    %c0_166 = arith.constant 0 : index
    %c8 = arith.constant 8 : index
    %c0_167 = arith.constant 0 : index
    %c0_168 = arith.constant 0 : index
    %c0_169 = arith.constant 0 : index
    %78 = vector.load %arg2[%c0_166, %c8, %c0_167, %c0_168, %c0_169] : memref<1x18x2x4x9xbf16, #tpu.memory_space<vmem>>, vector<1x1x1x4x8xbf16>
    %79 = vector.shape_cast %78 : vector<1x1x1x4x8xbf16> to vector<4x8xbf16>
    %c0_170 = arith.constant 0 : index
    %c8_171 = arith.constant 8 : index
    %c1_172 = arith.constant 1 : index
    %c0_173 = arith.constant 0 : index
    %c0_174 = arith.constant 0 : index
    %80 = vector.load %arg2[%c0_170, %c8_171, %c1_172, %c0_173, %c0_174] : memref<1x18x2x4x9xbf16, #tpu.memory_space<vmem>>, vector<1x1x1x4x8xbf16>
    %81 = vector.shape_cast %80 : vector<1x1x1x4x8xbf16> to vector<4x8xbf16>
    %c0_175 = arith.constant 0 : index
    %c8_176 = arith.constant 8 : index
    %c0_177 = arith.constant 0 : index
    %c0_178 = arith.constant 0 : index
    %c1_179 = arith.constant 1 : index
    %82 = vector.load %arg2[%c0_175, %c8_176, %c0_177, %c0_178, %c1_179] : memref<1x18x2x4x9xbf16, #tpu.memory_space<vmem>>, vector<1x1x1x4x8xbf16>
    %83 = vector.shape_cast %82 : vector<1x1x1x4x8xbf16> to vector<4x8xbf16>
    %84 = tpu.concatenate %67, %69, %71, %73, %75, %77, %79, %81, %83 in 0 : vector<4x8xbf16>, vector<4x8xbf16>, vector<4x8xbf16>, vector<4x8xbf16>, vector<4x8xbf16>, vector<4x8xbf16>, vector<4x8xbf16>, vector<4x8xbf16>, vector<4x8xbf16> -> vector<36x8xbf16>
    %c0_180 = arith.constant 0 : index
    %c0_181 = arith.constant 0 : index
    %85 = vector.load %arg3[%c0_180, %c0_181] : memref<8x36xbf16, #tpu.memory_space<vmem>>, vector<8x36xbf16>
    %cst_182 = arith.constant dense<0.000000e+00> : vector<8x8xf32>
    %86 = tpu.matmul %85, %84, %cst_182 {dimension_numbers = #tpu.dot_dimension_numbers<[1], [0], [0], [1], [0, 0, 1, 1], [], []>} : vector<8x36xbf16>, vector<36x8xbf16>, vector<8x8xf32> -> vector<8x8xf32>
    %c0_183 = arith.constant 0 : index
    %c8_184 = arith.constant 8 : index
    %c0_185 = arith.constant 0 : index
    %c0_186 = arith.constant 0 : index
    %c0_187 = arith.constant 0 : index
    %87 = vector.load %arg2[%c0_183, %c8_184, %c0_185, %c0_186, %c0_187] : memref<1x18x2x4x9xbf16, #tpu.memory_space<vmem>>, vector<1x1x1x4x8xbf16>
    %88 = vector.shape_cast %87 : vector<1x1x1x4x8xbf16> to vector<4x8xbf16>
    %c0_188 = arith.constant 0 : index
    %c8_189 = arith.constant 8 : index
    %c1_190 = arith.constant 1 : index
    %c0_191 = arith.constant 0 : index
    %c0_192 = arith.constant 0 : index
    %89 = vector.load %arg2[%c0_188, %c8_189, %c1_190, %c0_191, %c0_192] : memref<1x18x2x4x9xbf16, #tpu.memory_space<vmem>>, vector<1x1x1x4x8xbf16>
    %90 = vector.shape_cast %89 : vector<1x1x1x4x8xbf16> to vector<4x8xbf16>
    %c0_193 = arith.constant 0 : index
    %c8_194 = arith.constant 8 : index
    %c0_195 = arith.constant 0 : index
    %c0_196 = arith.constant 0 : index
    %c1_197 = arith.constant 1 : index
    %91 = vector.load %arg2[%c0_193, %c8_194, %c0_195, %c0_196, %c1_197] : memref<1x18x2x4x9xbf16, #tpu.memory_space<vmem>>, vector<1x1x1x4x8xbf16>
    %92 = vector.shape_cast %91 : vector<1x1x1x4x8xbf16> to vector<4x8xbf16>
    %c0_198 = arith.constant 0 : index
    %c9 = arith.constant 9 : index
    %c0_199 = arith.constant 0 : index
    %c0_200 = arith.constant 0 : index
    %c0_201 = arith.constant 0 : index
    %93 = vector.load %arg2[%c0_198, %c9, %c0_199, %c0_200, %c0_201] : memref<1x18x2x4x9xbf16, #tpu.memory_space<vmem>>, vector<1x1x1x4x8xbf16>
    %94 = vector.shape_cast %93 : vector<1x1x1x4x8xbf16> to vector<4x8xbf16>
    %c0_202 = arith.constant 0 : index
    %c9_203 = arith.constant 9 : index
    %c1_204 = arith.constant 1 : index
    %c0_205 = arith.constant 0 : index
    %c0_206 = arith.constant 0 : index
    %95 = vector.load %arg2[%c0_202, %c9_203, %c1_204, %c0_205, %c0_206] : memref<1x18x2x4x9xbf16, #tpu.memory_space<vmem>>, vector<1x1x1x4x8xbf16>
    %96 = vector.shape_cast %95 : vector<1x1x1x4x8xbf16> to vector<4x8xbf16>
    %c0_207 = arith.constant 0 : index
    %c9_208 = arith.constant 9 : index
    %c0_209 = arith.constant 0 : index
    %c0_210 = arith.constant 0 : index
    %c1_211 = arith.constant 1 : index
    %97 = vector.load %arg2[%c0_207, %c9_208, %c0_209, %c0_210, %c1_211] : memref<1x18x2x4x9xbf16, #tpu.memory_space<vmem>>, vector<1x1x1x4x8xbf16>
    %98 = vector.shape_cast %97 : vector<1x1x1x4x8xbf16> to vector<4x8xbf16>
    %c0_212 = arith.constant 0 : index
    %c10 = arith.constant 10 : index
    %c0_213 = arith.constant 0 : index
    %c0_214 = arith.constant 0 : index
    %c0_215 = arith.constant 0 : index
    %99 = vector.load %arg2[%c0_212, %c10, %c0_213, %c0_214, %c0_215] : memref<1x18x2x4x9xbf16, #tpu.memory_space<vmem>>, vector<1x1x1x4x8xbf16>
    %100 = vector.shape_cast %99 : vector<1x1x1x4x8xbf16> to vector<4x8xbf16>
    %c0_216 = arith.constant 0 : index
    %c10_217 = arith.constant 10 : index
    %c1_218 = arith.constant 1 : index
    %c0_219 = arith.constant 0 : index
    %c0_220 = arith.constant 0 : index
    %101 = vector.load %arg2[%c0_216, %c10_217, %c1_218, %c0_219, %c0_220] : memref<1x18x2x4x9xbf16, #tpu.memory_space<vmem>>, vector<1x1x1x4x8xbf16>
    %102 = vector.shape_cast %101 : vector<1x1x1x4x8xbf16> to vector<4x8xbf16>
    %c0_221 = arith.constant 0 : index
    %c10_222 = arith.constant 10 : index
    %c0_223 = arith.constant 0 : index
    %c0_224 = arith.constant 0 : index
    %c1_225 = arith.constant 1 : index
    %103 = vector.load %arg2[%c0_221, %c10_222, %c0_223, %c0_224, %c1_225] : memref<1x18x2x4x9xbf16, #tpu.memory_space<vmem>>, vector<1x1x1x4x8xbf16>
    %104 = vector.shape_cast %103 : vector<1x1x1x4x8xbf16> to vector<4x8xbf16>
    %105 = tpu.concatenate %88, %90, %92, %94, %96, %98, %100, %102, %104 in 0 : vector<4x8xbf16>, vector<4x8xbf16>, vector<4x8xbf16>, vector<4x8xbf16>, vector<4x8xbf16>, vector<4x8xbf16>, vector<4x8xbf16>, vector<4x8xbf16>, vector<4x8xbf16> -> vector<36x8xbf16>
    %c0_226 = arith.constant 0 : index
    %c0_227 = arith.constant 0 : index
    %106 = vector.load %arg3[%c0_226, %c0_227] : memref<8x36xbf16, #tpu.memory_space<vmem>>, vector<8x36xbf16>
    %cst_228 = arith.constant dense<0.000000e+00> : vector<8x8xf32>
    %107 = tpu.matmul %106, %105, %cst_228 {dimension_numbers = #tpu.dot_dimension_numbers<[1], [0], [0], [1], [0, 0, 1, 1], [], []>} : vector<8x36xbf16>, vector<36x8xbf16>, vector<8x8xf32> -> vector<8x8xf32>
    %c0_229 = arith.constant 0 : index
    %c10_230 = arith.constant 10 : index
    %c0_231 = arith.constant 0 : index
    %c0_232 = arith.constant 0 : index
    %c0_233 = arith.constant 0 : index
    %108 = vector.load %arg2[%c0_229, %c10_230, %c0_231, %c0_232, %c0_233] : memref<1x18x2x4x9xbf16, #tpu.memory_space<vmem>>, vector<1x1x1x4x8xbf16>
    %109 = vector.shape_cast %108 : vector<1x1x1x4x8xbf16> to vector<4x8xbf16>
    %c0_234 = arith.constant 0 : index
    %c10_235 = arith.constant 10 : index
    %c1_236 = arith.constant 1 : index
    %c0_237 = arith.constant 0 : index
    %c0_238 = arith.constant 0 : index
    %110 = vector.load %arg2[%c0_234, %c10_235, %c1_236, %c0_237, %c0_238] : memref<1x18x2x4x9xbf16, #tpu.memory_space<vmem>>, vector<1x1x1x4x8xbf16>
    %111 = vector.shape_cast %110 : vector<1x1x1x4x8xbf16> to vector<4x8xbf16>
    %c0_239 = arith.constant 0 : index
    %c10_240 = arith.constant 10 : index
    %c0_241 = arith.constant 0 : index
    %c0_242 = arith.constant 0 : index
    %c1_243 = arith.constant 1 : index
    %112 = vector.load %arg2[%c0_239, %c10_240, %c0_241, %c0_242, %c1_243] : memref<1x18x2x4x9xbf16, #tpu.memory_space<vmem>>, vector<1x1x1x4x8xbf16>
    %113 = vector.shape_cast %112 : vector<1x1x1x4x8xbf16> to vector<4x8xbf16>
    %c0_244 = arith.constant 0 : index
    %c11 = arith.constant 11 : index
    %c0_245 = arith.constant 0 : index
    %c0_246 = arith.constant 0 : index
    %c0_247 = arith.constant 0 : index
    %114 = vector.load %arg2[%c0_244, %c11, %c0_245, %c0_246, %c0_247] : memref<1x18x2x4x9xbf16, #tpu.memory_space<vmem>>, vector<1x1x1x4x8xbf16>
    %115 = vector.shape_cast %114 : vector<1x1x1x4x8xbf16> to vector<4x8xbf16>
    %c0_248 = arith.constant 0 : index
    %c11_249 = arith.constant 11 : index
    %c1_250 = arith.constant 1 : index
    %c0_251 = arith.constant 0 : index
    %c0_252 = arith.constant 0 : index
    %116 = vector.load %arg2[%c0_248, %c11_249, %c1_250, %c0_251, %c0_252] : memref<1x18x2x4x9xbf16, #tpu.memory_space<vmem>>, vector<1x1x1x4x8xbf16>
    %117 = vector.shape_cast %116 : vector<1x1x1x4x8xbf16> to vector<4x8xbf16>
    %c0_253 = arith.constant 0 : index
    %c11_254 = arith.constant 11 : index
    %c0_255 = arith.constant 0 : index
    %c0_256 = arith.constant 0 : index
    %c1_257 = arith.constant 1 : index
    %118 = vector.load %arg2[%c0_253, %c11_254, %c0_255, %c0_256, %c1_257] : memref<1x18x2x4x9xbf16, #tpu.memory_space<vmem>>, vector<1x1x1x4x8xbf16>
    %119 = vector.shape_cast %118 : vector<1x1x1x4x8xbf16> to vector<4x8xbf16>
    %c0_258 = arith.constant 0 : index
    %c12 = arith.constant 12 : index
    %c0_259 = arith.constant 0 : index
    %c0_260 = arith.constant 0 : index
    %c0_261 = arith.constant 0 : index
    %120 = vector.load %arg2[%c0_258, %c12, %c0_259, %c0_260, %c0_261] : memref<1x18x2x4x9xbf16, #tpu.memory_space<vmem>>, vector<1x1x1x4x8xbf16>
    %121 = vector.shape_cast %120 : vector<1x1x1x4x8xbf16> to vector<4x8xbf16>
    %c0_262 = arith.constant 0 : index
    %c12_263 = arith.constant 12 : index
    %c1_264 = arith.constant 1 : index
    %c0_265 = arith.constant 0 : index
    %c0_266 = arith.constant 0 : index
    %122 = vector.load %arg2[%c0_262, %c12_263, %c1_264, %c0_265, %c0_266] : memref<1x18x2x4x9xbf16, #tpu.memory_space<vmem>>, vector<1x1x1x4x8xbf16>
    %123 = vector.shape_cast %122 : vector<1x1x1x4x8xbf16> to vector<4x8xbf16>
    %c0_267 = arith.constant 0 : index
    %c12_268 = arith.constant 12 : index
    %c0_269 = arith.constant 0 : index
    %c0_270 = arith.constant 0 : index
    %c1_271 = arith.constant 1 : index
    %124 = vector.load %arg2[%c0_267, %c12_268, %c0_269, %c0_270, %c1_271] : memref<1x18x2x4x9xbf16, #tpu.memory_space<vmem>>, vector<1x1x1x4x8xbf16>
    %125 = vector.shape_cast %124 : vector<1x1x1x4x8xbf16> to vector<4x8xbf16>
    %126 = tpu.concatenate %109, %111, %113, %115, %117, %119, %121, %123, %125 in 0 : vector<4x8xbf16>, vector<4x8xbf16>, vector<4x8xbf16>, vector<4x8xbf16>, vector<4x8xbf16>, vector<4x8xbf16>, vector<4x8xbf16>, vector<4x8xbf16>, vector<4x8xbf16> -> vector<36x8xbf16>
    %c0_272 = arith.constant 0 : index
    %c0_273 = arith.constant 0 : index
    %127 = vector.load %arg3[%c0_272, %c0_273] : memref<8x36xbf16, #tpu.memory_space<vmem>>, vector<8x36xbf16>
    %cst_274 = arith.constant dense<0.000000e+00> : vector<8x8xf32>
    %128 = tpu.matmul %127, %126, %cst_274 {dimension_numbers = #tpu.dot_dimension_numbers<[1], [0], [0], [1], [0, 0, 1, 1], [], []>} : vector<8x36xbf16>, vector<36x8xbf16>, vector<8x8xf32> -> vector<8x8xf32>
    %c0_275 = arith.constant 0 : index
    %c12_276 = arith.constant 12 : index
    %c0_277 = arith.constant 0 : index
    %c0_278 = arith.constant 0 : index
    %c0_279 = arith.constant 0 : index
    %129 = vector.load %arg2[%c0_275, %c12_276, %c0_277, %c0_278, %c0_279] : memref<1x18x2x4x9xbf16, #tpu.memory_space<vmem>>, vector<1x1x1x4x8xbf16>
    %130 = vector.shape_cast %129 : vector<1x1x1x4x8xbf16> to vector<4x8xbf16>
    %c0_280 = arith.constant 0 : index
    %c12_281 = arith.constant 12 : index
    %c1_282 = arith.constant 1 : index
    %c0_283 = arith.constant 0 : index
    %c0_284 = arith.constant 0 : index
    %131 = vector.load %arg2[%c0_280, %c12_281, %c1_282, %c0_283, %c0_284] : memref<1x18x2x4x9xbf16, #tpu.memory_space<vmem>>, vector<1x1x1x4x8xbf16>
    %132 = vector.shape_cast %131 : vector<1x1x1x4x8xbf16> to vector<4x8xbf16>
    %c0_285 = arith.constant 0 : index
    %c12_286 = arith.constant 12 : index
    %c0_287 = arith.constant 0 : index
    %c0_288 = arith.constant 0 : index
    %c1_289 = arith.constant 1 : index
    %133 = vector.load %arg2[%c0_285, %c12_286, %c0_287, %c0_288, %c1_289] : memref<1x18x2x4x9xbf16, #tpu.memory_space<vmem>>, vector<1x1x1x4x8xbf16>
    %134 = vector.shape_cast %133 : vector<1x1x1x4x8xbf16> to vector<4x8xbf16>
    %c0_290 = arith.constant 0 : index
    %c13 = arith.constant 13 : index
    %c0_291 = arith.constant 0 : index
    %c0_292 = arith.constant 0 : index
    %c0_293 = arith.constant 0 : index
    %135 = vector.load %arg2[%c0_290, %c13, %c0_291, %c0_292, %c0_293] : memref<1x18x2x4x9xbf16, #tpu.memory_space<vmem>>, vector<1x1x1x4x8xbf16>
    %136 = vector.shape_cast %135 : vector<1x1x1x4x8xbf16> to vector<4x8xbf16>
    %c0_294 = arith.constant 0 : index
    %c13_295 = arith.constant 13 : index
    %c1_296 = arith.constant 1 : index
    %c0_297 = arith.constant 0 : index
    %c0_298 = arith.constant 0 : index
    %137 = vector.load %arg2[%c0_294, %c13_295, %c1_296, %c0_297, %c0_298] : memref<1x18x2x4x9xbf16, #tpu.memory_space<vmem>>, vector<1x1x1x4x8xbf16>
    %138 = vector.shape_cast %137 : vector<1x1x1x4x8xbf16> to vector<4x8xbf16>
    %c0_299 = arith.constant 0 : index
    %c13_300 = arith.constant 13 : index
    %c0_301 = arith.constant 0 : index
    %c0_302 = arith.constant 0 : index
    %c1_303 = arith.constant 1 : index
    %139 = vector.load %arg2[%c0_299, %c13_300, %c0_301, %c0_302, %c1_303] : memref<1x18x2x4x9xbf16, #tpu.memory_space<vmem>>, vector<1x1x1x4x8xbf16>
    %140 = vector.shape_cast %139 : vector<1x1x1x4x8xbf16> to vector<4x8xbf16>
    %c0_304 = arith.constant 0 : index
    %c14 = arith.constant 14 : index
    %c0_305 = arith.constant 0 : index
    %c0_306 = arith.constant 0 : index
    %c0_307 = arith.constant 0 : index
    %141 = vector.load %arg2[%c0_304, %c14, %c0_305, %c0_306, %c0_307] : memref<1x18x2x4x9xbf16, #tpu.memory_space<vmem>>, vector<1x1x1x4x8xbf16>
    %142 = vector.shape_cast %141 : vector<1x1x1x4x8xbf16> to vector<4x8xbf16>
    %c0_308 = arith.constant 0 : index
    %c14_309 = arith.constant 14 : index
    %c1_310 = arith.constant 1 : index
    %c0_311 = arith.constant 0 : index
    %c0_312 = arith.constant 0 : index
    %143 = vector.load %arg2[%c0_308, %c14_309, %c1_310, %c0_311, %c0_312] : memref<1x18x2x4x9xbf16, #tpu.memory_space<vmem>>, vector<1x1x1x4x8xbf16>
    %144 = vector.shape_cast %143 : vector<1x1x1x4x8xbf16> to vector<4x8xbf16>
    %c0_313 = arith.constant 0 : index
    %c14_314 = arith.constant 14 : index
    %c0_315 = arith.constant 0 : index
    %c0_316 = arith.constant 0 : index
    %c1_317 = arith.constant 1 : index
    %145 = vector.load %arg2[%c0_313, %c14_314, %c0_315, %c0_316, %c1_317] : memref<1x18x2x4x9xbf16, #tpu.memory_space<vmem>>, vector<1x1x1x4x8xbf16>
    %146 = vector.shape_cast %145 : vector<1x1x1x4x8xbf16> to vector<4x8xbf16>
    %147 = tpu.concatenate %130, %132, %134, %136, %138, %140, %142, %144, %146 in 0 : vector<4x8xbf16>, vector<4x8xbf16>, vector<4x8xbf16>, vector<4x8xbf16>, vector<4x8xbf16>, vector<4x8xbf16>, vector<4x8xbf16>, vector<4x8xbf16>, vector<4x8xbf16> -> vector<36x8xbf16>
    %c0_318 = arith.constant 0 : index
    %c0_319 = arith.constant 0 : index
    %148 = vector.load %arg3[%c0_318, %c0_319] : memref<8x36xbf16, #tpu.memory_space<vmem>>, vector<8x36xbf16>
    %cst_320 = arith.constant dense<0.000000e+00> : vector<8x8xf32>
    %149 = tpu.matmul %148, %147, %cst_320 {dimension_numbers = #tpu.dot_dimension_numbers<[1], [0], [0], [1], [0, 0, 1, 1], [], []>} : vector<8x36xbf16>, vector<36x8xbf16>, vector<8x8xf32> -> vector<8x8xf32>
    %c0_321 = arith.constant 0 : index
    %c14_322 = arith.constant 14 : index
    %c0_323 = arith.constant 0 : index
    %c0_324 = arith.constant 0 : index
    %c0_325 = arith.constant 0 : index
    %150 = vector.load %arg2[%c0_321, %c14_322, %c0_323, %c0_324, %c0_325] : memref<1x18x2x4x9xbf16, #tpu.memory_space<vmem>>, vector<1x1x1x4x8xbf16>
    %151 = vector.shape_cast %150 : vector<1x1x1x4x8xbf16> to vector<4x8xbf16>
    %c0_326 = arith.constant 0 : index
    %c14_327 = arith.constant 14 : index
    %c1_328 = arith.constant 1 : index
    %c0_329 = arith.constant 0 : index
    %c0_330 = arith.constant 0 : index
    %152 = vector.load %arg2[%c0_326, %c14_327, %c1_328, %c0_329, %c0_330] : memref<1x18x2x4x9xbf16, #tpu.memory_space<vmem>>, vector<1x1x1x4x8xbf16>
    %153 = vector.shape_cast %152 : vector<1x1x1x4x8xbf16> to vector<4x8xbf16>
    %c0_331 = arith.constant 0 : index
    %c14_332 = arith.constant 14 : index
    %c0_333 = arith.constant 0 : index
    %c0_334 = arith.constant 0 : index
    %c1_335 = arith.constant 1 : index
    %154 = vector.load %arg2[%c0_331, %c14_332, %c0_333, %c0_334, %c1_335] : memref<1x18x2x4x9xbf16, #tpu.memory_space<vmem>>, vector<1x1x1x4x8xbf16>
    %155 = vector.shape_cast %154 : vector<1x1x1x4x8xbf16> to vector<4x8xbf16>
    %c0_336 = arith.constant 0 : index
    %c15 = arith.constant 15 : index
    %c0_337 = arith.constant 0 : index
    %c0_338 = arith.constant 0 : index
    %c0_339 = arith.constant 0 : index
    %156 = vector.load %arg2[%c0_336, %c15, %c0_337, %c0_338, %c0_339] : memref<1x18x2x4x9xbf16, #tpu.memory_space<vmem>>, vector<1x1x1x4x8xbf16>
    %157 = vector.shape_cast %156 : vector<1x1x1x4x8xbf16> to vector<4x8xbf16>
    %c0_340 = arith.constant 0 : index
    %c15_341 = arith.constant 15 : index
    %c1_342 = arith.constant 1 : index
    %c0_343 = arith.constant 0 : index
    %c0_344 = arith.constant 0 : index
    %158 = vector.load %arg2[%c0_340, %c15_341, %c1_342, %c0_343, %c0_344] : memref<1x18x2x4x9xbf16, #tpu.memory_space<vmem>>, vector<1x1x1x4x8xbf16>
    %159 = vector.shape_cast %158 : vector<1x1x1x4x8xbf16> to vector<4x8xbf16>
    %c0_345 = arith.constant 0 : index
    %c15_346 = arith.constant 15 : index
    %c0_347 = arith.constant 0 : index
    %c0_348 = arith.constant 0 : index
    %c1_349 = arith.constant 1 : index
    %160 = vector.load %arg2[%c0_345, %c15_346, %c0_347, %c0_348, %c1_349] : memref<1x18x2x4x9xbf16, #tpu.memory_space<vmem>>, vector<1x1x1x4x8xbf16>
    %161 = vector.shape_cast %160 : vector<1x1x1x4x8xbf16> to vector<4x8xbf16>
    %c0_350 = arith.constant 0 : index
    %c16 = arith.constant 16 : index
    %c0_351 = arith.constant 0 : index
    %c0_352 = arith.constant 0 : index
    %c0_353 = arith.constant 0 : index
    %162 = vector.load %arg2[%c0_350, %c16, %c0_351, %c0_352, %c0_353] : memref<1x18x2x4x9xbf16, #tpu.memory_space<vmem>>, vector<1x1x1x4x8xbf16>
    %163 = vector.shape_cast %162 : vector<1x1x1x4x8xbf16> to vector<4x8xbf16>
    %c0_354 = arith.constant 0 : index
    %c16_355 = arith.constant 16 : index
    %c1_356 = arith.constant 1 : index
    %c0_357 = arith.constant 0 : index
    %c0_358 = arith.constant 0 : index
    %164 = vector.load %arg2[%c0_354, %c16_355, %c1_356, %c0_357, %c0_358] : memref<1x18x2x4x9xbf16, #tpu.memory_space<vmem>>, vector<1x1x1x4x8xbf16>
    %165 = vector.shape_cast %164 : vector<1x1x1x4x8xbf16> to vector<4x8xbf16>
    %c0_359 = arith.constant 0 : index
    %c16_360 = arith.constant 16 : index
    %c0_361 = arith.constant 0 : index
    %c0_362 = arith.constant 0 : index
    %c1_363 = arith.constant 1 : index
    %166 = vector.load %arg2[%c0_359, %c16_360, %c0_361, %c0_362, %c1_363] : memref<1x18x2x4x9xbf16, #tpu.memory_space<vmem>>, vector<1x1x1x4x8xbf16>
    %167 = vector.shape_cast %166 : vector<1x1x1x4x8xbf16> to vector<4x8xbf16>
    %168 = tpu.concatenate %151, %153, %155, %157, %159, %161, %163, %165, %167 in 0 : vector<4x8xbf16>, vector<4x8xbf16>, vector<4x8xbf16>, vector<4x8xbf16>, vector<4x8xbf16>, vector<4x8xbf16>, vector<4x8xbf16>, vector<4x8xbf16>, vector<4x8xbf16> -> vector<36x8xbf16>
    %c0_364 = arith.constant 0 : index
    %c0_365 = arith.constant 0 : index
    %169 = vector.load %arg3[%c0_364, %c0_365] : memref<8x36xbf16, #tpu.memory_space<vmem>>, vector<8x36xbf16>
    %cst_366 = arith.constant dense<0.000000e+00> : vector<8x8xf32>
    %170 = tpu.matmul %169, %168, %cst_366 {dimension_numbers = #tpu.dot_dimension_numbers<[1], [0], [0], [1], [0, 0, 1, 1], [], []>} : vector<8x36xbf16>, vector<36x8xbf16>, vector<8x8xf32> -> vector<8x8xf32>
    %171 = tpu.concatenate %23, %44, %65, %86, %107, %128, %149, %170 in 1 : vector<8x8xf32>, vector<8x8xf32>, vector<8x8xf32>, vector<8x8xf32>, vector<8x8xf32>, vector<8x8xf32>, vector<8x8xf32>, vector<8x8xf32> -> vector<8x64xf32>
    %c0_367 = arith.constant 0 : index
    %c0_368 = arith.constant 0 : index
    %c0_369 = arith.constant 0 : index
    %172 = vector.load %arg4[%c0_367, %c0_368, %c0_369] : memref<1x8x2xf32, #tpu.memory_space<vmem>>, vector<1x8x1xf32>
    %173 = vector.shape_cast %172 : vector<1x8x1xf32> to vector<8x1xf32>
    %cst_370 = arith.constant dense<0.000000e+00> : vector<8xf32>
    %174 = vector.multi_reduction <add>, %171, %cst_370 [1] : vector<8x64xf32> to vector<8xf32>
    %175 = vector.shape_cast %174 : vector<8xf32> to vector<8x1xf32>
    %176 = arith.addf %173, %175 : vector<8x1xf32>
    %c0_371 = arith.constant 0 : index
    %c0_372 = arith.constant 0 : index
    %c0_373 = arith.constant 0 : index
    %177 = vector.load %arg4[%c0_371, %c0_372, %c0_373] : memref<1x8x2xf32, #tpu.memory_space<vmem>>, vector<1x8x1xf32>
    %178 = vector.shape_cast %177 : vector<1x8x1xf32> to vector<8x1xf32>
    %179 = vector.shape_cast %176 : vector<8x1xf32> to vector<1x8x1xf32>
    tpu.vector_store %arg4[%c0_371, %c0_372, %c0_373], %179 {strides = array<i32>} : memref<1x8x2xf32, #tpu.memory_space<vmem>>, vector<1x8x1xf32>,
    %c0_374 = arith.constant 0 : index
    %c0_375 = arith.constant 0 : index
    %c1_376 = arith.constant 1 : index
    %180 = vector.load %arg4[%c0_374, %c0_375, %c1_376] : memref<1x8x2xf32, #tpu.memory_space<vmem>>, vector<1x8x1xf32>
    %181 = vector.shape_cast %180 : vector<1x8x1xf32> to vector<8x1xf32>
    %182 = arith.mulf %171, %171 : vector<8x64xf32>
    %cst_377 = arith.constant dense<0.000000e+00> : vector<8xf32>
    %183 = vector.multi_reduction <add>, %182, %cst_377 [1] : vector<8x64xf32> to vector<8xf32>
    %184 = vector.shape_cast %183 : vector<8xf32> to vector<8x1xf32>
    %185 = arith.addf %181, %184 : vector<8x1xf32>
    %c0_378 = arith.constant 0 : index
    %c0_379 = arith.constant 0 : index
    %c1_380 = arith.constant 1 : index
    %186 = vector.load %arg4[%c0_378, %c0_379, %c1_380] : memref<1x8x2xf32, #tpu.memory_space<vmem>>, vector<1x8x1xf32>
    %187 = vector.shape_cast %186 : vector<1x8x1xf32> to vector<8x1xf32>
    %188 = vector.shape_cast %185 : vector<8x1xf32> to vector<1x8x1xf32>
    tpu.vector_store %arg4[%c0_378, %c0_379, %c1_380], %188 {strides = array<i32>} : memref<1x8x2xf32, #tpu.memory_space<vmem>>, vector<1x8x1xf32>,
    return
  }
  func.func @transform_0(%arg0: i32, %arg1: i32) -> (i32, i32, i32, i32, i32) {
    %c1_i32 = arith.constant 1 : i32
    %0 = arith.muli %arg0, %c1_i32 : i32
    %1 = arith.addi %0, %arg1 : i32
    %c0_i32 = arith.constant 0 : i32
    %c0_i32_0 = arith.constant 0 : i32
    %c0_i32_1 = arith.constant 0 : i32
    %c0_i32_2 = arith.constant 0 : i32
    %c0_i32_3 = arith.constant 0 : i32
    return %1, %c0_i32, %c0_i32_0, %c0_i32_1, %c0_i32_2 : i32, i32, i32, i32, i32
  }
  func.func @transform_1(%arg0: i32, %arg1: i32) -> (i32, i32) {
    %c0_i32 = arith.constant 0 : i32
    %c0_i32_0 = arith.constant 0 : i32
    %c0_i32_1 = arith.constant 0 : i32
    return %c0_i32, %c0_i32_0 : i32, i32
  }
  func.func @transform_2(%arg0: i32, %arg1: i32) -> (i32, i32, i32) {
    %c0_i32 = arith.constant 0 : i32
    %c0_i32_0 = arith.constant 0 : i32
    %c0_i32_1 = arith.constant 0 : i32
    return %arg0, %c0_i32, %c0_i32_0 : i32, i32, i32
  }
}

</mosaic_0001>

<llo_original>
// kernel: tpu_custom_call.1
$region0: #{tpu_custom_call.1}
  #allocation0 [shape = 'u32[]', space=smem, size = 0x4, offset = 0x4, fixed_abs, tag = 'smem constant byte address 0x4 - core index']
  #allocation1 [shape = 'u32[144,128]{1,0:T(1,128)}', space=vmem, size = 0x12000, scoped, tag = 'internal scratch']
  %s0 = inlined_call_operand.vmem [shape: bf16[2,18,2,4,9], index: 0, kind: input, shape index: {}]
  %s1 = inlined_call_operand.vmem [shape: bf16[8,36], index: 1, kind: input, shape index: {}]
  %s2 = inlined_call_operand.vmem [shape: f32[2,8,2], index: 2, kind: output, shape index: {}]
  %s3 = sld [smem:[#allocation0]]
  $region45: #{tpu_custom_call.1} parent=0
    _
  %s5 = ssub.s32 1, %s3
  %s6 = scalar_select 0, %s5, %s3
  loop: start=0, step=1, limit=4
  $region2: #{tpu_custom_call.1} parent=0 // loop_pre_header
    _
  $region3: #{tpu_custom_call.1} parent=0 // loop_header
    %s8 = sphi 0, %s12
    %p9 = scmp.ge.s32.totalorder %s8, 4
    %s15 = sphi 0, %s27
    %s16 = sphi 0, %s23
    %s17 = sphi 0, %s15
    %s18 = sphi 0, %s16
    %s19 = sphi 0, %s17
    %s20 = sphi 0, %s18
    %s32 = sphi 0, %s34
    %s35 = sphi 0, %s32
    %s36 = sphi 0, %s35
    %s52 = sphi 0, %s36
    %s56 = sphi 0, %s56
    %s58 = sphi 0, %s56
    %s59 = sphi 0, %s58
    %s73 = sphi 0, %s59
    %s79 = sphi 0, %s81
    %s82 = sphi 0, %s79
    %s83 = sphi 0, %s82
    %s99 = sphi 0, %s83
  $region4: #{tpu_custom_call.1} parent=0 // loop_header_branch
    %11 = sbr.rel (%p9) target = $region8
  $region5: #{tpu_custom_call.1} parent=0 // loop_body
    %s13 = ssub.s32 %s8, 1
    %s14 = ssub.s32 %s8, 2
    %s21 = sadd.s32 1, %s16
    %p22 = scmp.ge.s32.totalorder %s21, 1
    %s23 = scalar_select %p22, 0, %s21
    %s24 = sadd.s32 1, %s15
    %s25 = scalar_select %p22, %s24, %s15
    %p26 = scmp.ge.s32.totalorder %s25, 2
    %s27 = scalar_select %p26, 0, %s25
    %s28 = sadd.s32 %s15, %s16
    %s29 = sadd.s32 %s27, %s23
    %s30 = ssub.s32 %s28, %s29
    %p31 = scmp.eq.s32.totalorder %s30, 0
    %s33 = sadd.s32 %s32, 1
    %s34 = scalar_select %p31, %s32, %s33
    %p37 = pneg %p31
    %p38 = scmp.eq.s32.totalorder %s8, 1
    %p39 = por %p37, %p38
    %p40 = scmp.ne.s32.totalorder %s32, %s35
    %p41 = scmp.eq.s32.totalorder %s8, 0
    %p42 = por %p40, %p41
    %p43 = scmp.ne.s32.totalorder %s32, %s35
    %p44 = scmp.eq.s32.totalorder %s13, 1
    %p45 = por %p43, %p44
    %p46 = scmp.ne.s32.totalorder %s35, %s36
    %p47 = scmp.eq.s32.totalorder %s13, 0
    %p48 = por %p46, %p47
    %p49 = scmp.ne.s32.totalorder %s35, %s36
    %p50 = scmp.eq.s32.totalorder %s14, 1
    %p51 = por %p49, %p50
    %p53 = scmp.ne.s32.totalorder %s36, %s52
    %p54 = scmp.eq.s32.totalorder %s14, 0
    %p55 = por %p53, %p54
    %s57 = sadd.s32 %s56, 1
    %p60 = scmp.eq.s32.totalorder %s8, 1
    %p61 = scmp.ne.s32.totalorder %s56, %s58
    %p62 = scmp.eq.s32.totalorder %s8, 0
    %p63 = por %p61, %p62
    %p64 = scmp.ne.s32.totalorder %s56, %s58
    %p65 = scmp.eq.s32.totalorder %s13, 1
    %p66 = por %p64, %p65
    %p67 = scmp.ne.s32.totalorder %s58, %s59
    %p68 = scmp.eq.s32.totalorder %s13, 0
    %p69 = por %p67, %p68
    %p70 = scmp.ne.s32.totalorder %s58, %s59
    %p71 = scmp.eq.s32.totalorder %s14, 1
    %p72 = por %p70, %p71
    %p74 = scmp.ne.s32.totalorder %s59, %s73
    %p75 = scmp.eq.s32.totalorder %s14, 0
    %p76 = por %p74, %p75
    %s77 = ssub.s32 %s15, %s27
    %p78 = scmp.eq.s32.totalorder %s77, 0
    %s80 = sadd.s32 %s79, 1
    %s81 = scalar_select %p78, %s79, %s80
    %p84 = pneg %p78
    %p85 = scmp.eq.s32.totalorder %s8, 1
    %p86 = por %p84, %p85
    %p87 = scmp.ne.s32.totalorder %s79, %s82
    %p88 = scmp.eq.s32.totalorder %s8, 0
    %p89 = por %p87, %p88
    %p90 = scmp.ne.s32.totalorder %s79, %s82
    %p91 = scmp.eq.s32.totalorder %s13, 1
    %p92 = por %p90, %p91
    %p93 = scmp.ne.s32.totalorder %s82, %s83
    %p94 = scmp.eq.s32.totalorder %s13, 0
    %p95 = por %p93, %p94
    %p96 = scmp.ne.s32.totalorder %s82, %s83
    %p97 = scmp.eq.s32.totalorder %s14, 1
    %p98 = por %p96, %p97
    %p100 = scmp.ne.s32.totalorder %s83, %s99
    %p101 = scmp.eq.s32.totalorder %s14, 0
    %p102 = por %p100, %p101
    %p103 = scmp.le.s32.totalorder 1, %s8
    %p104 = scmp.lt.s32.totalorder %s8, 3
    %p105 = pnand %p103, %p104
    %p106 = pneg %p105
    // Predicated region
    $region9: #{tpu_custom_call.1} parent=5 // pred_check
      _
    $region10: #{tpu_custom_call.1} parent=5 // pred_check_branch
      %108 = sbr.rel (%p105) target = $region12
    $region11: #{tpu_custom_call.1} parent=5 // pred_region
      %s109 = ssub.s32 %s8, 1
      // Predicated region
      $region13: #{tpu_custom_call.1} parent=11 // pred_check
        %p110 = pneg %p69
      $region14: #{tpu_custom_call.1} parent=11 // pred_check_branch
        %112 = sbr.rel (%p110) target = $region16
      $region15: #{tpu_custom_call.1} parent=11 // pred_region
        _
      $region16: #{tpu_custom_call.1} parent=11 // pred_fallthru
        _
    $region12: #{tpu_custom_call.1} parent=5 // pred_fallthru
      _
    %p113 = scmp.lt.s32.totalorder %s8, 2
    // Predicated region
    $region17: #{tpu_custom_call.1} parent=5 // pred_check
      %p114 = pneg %p113
    $region18: #{tpu_custom_call.1} parent=5 // pred_check_branch
      %116 = sbr.rel (%p114) target = $region20
    $region19: #{tpu_custom_call.1} parent=5 // pred_region
      // Predicated region
      $region21: #{tpu_custom_call.1} parent=19 // pred_check
        %p117 = pneg %p42
      $region22: #{tpu_custom_call.1} parent=19 // pred_check_branch
        %119 = sbr.rel (%p117) target = $region24
      $region23: #{tpu_custom_call.1} parent=19 // pred_region
        %s120 = sadd.s32 %s15, %s16
        %p121 = scmp.lt.s32.totalorder %s120, 1
        %s122 = scalar_select %p121, %s120, 1
        %s123 = smul.addr %s122, 36
        %s124 = smul.addr %s123, 2
        %s125 = scalar_lea.vmem %s0, %s124
        %s126 = sadd.s32 %s15, %s16
      $region24: #{tpu_custom_call.1} parent=19 // pred_fallthru
        _
    $region20: #{tpu_custom_call.1} parent=5 // pred_fallthru
      _
    %p127 = scmp.le.s32.totalorder 1, %s8
    %p128 = scmp.lt.s32.totalorder %s8, 3
    %p129 = pnand %p127, %p128
    %p130 = pneg %p129
    // Predicated region
    $region25: #{tpu_custom_call.1} parent=5 // pred_check
      _
    $region26: #{tpu_custom_call.1} parent=5 // pred_check_branch
      %132 = sbr.rel (%p129) target = $region28
    $region27: #{tpu_custom_call.1} parent=5 // pred_region
      %s133 = ssub.s32 %s8, 1
      %s134 = sadd.s32 %s17, %s18
      %p135 = scmp.lt.s32.totalorder %s134, 1
      %s136 = scalar_select %p135, %s134, 1
      %s137 = smul.addr %s136, 36
      %s138 = smul.addr %s137, 2
      %s139 = scalar_lea.vmem %s0, %s138
      %p140 = pneg %p48
      %p141 = pneg %p45
      %p142 = pneg %p69
      %p143 = pneg %p66
      %p144 = pneg %p95
      %p145 = pneg %p92
      %p146 = scmp.lt.s32.totalorder %s17, 1
      %s147 = scalar_select %p146, %s17, 1
      %s148 = smul.addr %s147, 8
      %s149 = scalar_lea.vmem %s2, %s148
      %s150 = sadd.s32 %s17, %s18
      %p151 = scmp.lt.s32.totalorder %s150, 1
      %s152 = scalar_select %p151, %s150, 1
      %s153 = smul.addr %s152, 36
      %s154 = smul.addr %s153, 2
      %s155 = scalar_lea.vmem %s0, %s154
      %s156 = sadd.s32 %s17, %s18
      %p157 = scmp.lt.s32.totalorder %s17, 1
      %s158 = scalar_select %p157, %s17, 1
      %s159 = smul.addr %s158, 8
      %s160 = scalar_lea.vmem %s2, %s159
      %p162 = scmp.eq.s32.totalorder %s18, 0
      // Predicated region
      $region29: #{tpu_custom_call.1} parent=27 // pred_check
        %p163 = pneg %p162
      $region30: #{tpu_custom_call.1} parent=27 // pred_check_branch
        %165 = sbr.rel (%p163) target = $region32
      $region31: #{tpu_custom_call.1} parent=27 // pred_region
        %vm166 = vcmask 15360
        %167 = vst.msk [vmem:[%s160] sm:$0xff] %vm166, 0.0
      $region32: #{tpu_custom_call.1} parent=27 // pred_fallthru
        _
      %v168 = vld [vmem:[%s155] sm:$0x3]
      %s169 = scalar_lea.vmem %s155, 2
      %v170 = vld [vmem:[%s169] sm:$0x3]
      %s171 = scalar_lea.vmem %s155, 4
      %v172 = vld [vmem:[%s171] sm:$0x3]
      %s173 = scalar_lea.vmem %s155, 6
      %v174 = vld [vmem:[%s173] sm:$0x3]
      %s175 = scalar_lea.vmem %s155, 8
      %v176 = vld [vmem:[%s175] sm:$0x3]
      %s177 = scalar_lea.vmem %s155, 10
      %v178 = vld [vmem:[%s177] sm:$0x3]
      %v180 = vcombine.low %v170, %v170
      %v182 = vunpack.c.l.s4 1983009808
      %v183 = vunpack.c.0.s8 %v182
      %v184 = vlaneseq
      %v185 = vshrl.u32 %v184, 7
      %v186 = vsub.s32 %v183, %v185
      %v187 = vrot.slane %v180, %v186
      %v190 = vunpack.c.l.s4 1983009808
      %v191 = vunpack.c.0.s8 %v190
      %v192 = vlaneseq
      %v193 = vshrl.u32 %v192, 7
      %v194 = vsub.s32 %v191, %v193
      %v195 = vrot.slane %v168, %v194
      %v196 = vcombine.low %v195, %v195
      %197 = vrot.lane.b32.xlu0 %v196, 127
      %v198 = vpop.permute.xlu0 %197
      %v200 = vcombine.low %v172, %v172
      %v202 = vunpack.c.l.s4 1983009808
      %v203 = vunpack.c.0.s8 %v202
      %v204 = vlaneseq
      %v205 = vshrl.u32 %v204, 7
      %v206 = vsub.s32 %v203, %v205
      %v207 = vrot.slane %v200, %v206
      %v208 = vcombine.low %v207, %v207
      %209 = vrot.lane.b32.xlu0 %v207, 127
      %v210 = vpop.permute.xlu0 %209
      %v213 = vunpack.c.l.s4 1983009808
      %v214 = vunpack.c.0.s8 %v213
      %v215 = vlaneseq
      %v216 = vshrl.u32 %v215, 7
      %v217 = vsub.s32 %v214, %v216
      %v218 = vrot.slane %v176, %v217
      %v219 = vcombine.low %v218, %v218
      %v221 = vcombine.low %v178, %v178
      %v223 = vunpack.c.l.s4 1983009808
      %v224 = vunpack.c.0.s8 %v223
      %v225 = vlaneseq
      %v226 = vshrl.u32 %v225, 7
      %v227 = vsub.s32 %v224, %v226
      %v228 = vrot.slane %v221, %v227
      %v229 = vcombine.low %v228, %v228
      %230 = vrot.lane.b32.xlu0 %v218, 127
      %v231 = vpop.permute.xlu0 %230
      %vm232 = vcmask 1041408
      %v235 = vsel %vm232, %v168, %v187
      %vm236 = vcmask 1043456
      %v238 = vsel %vm236, %v235, %v198
      %vm239 = vcmask 1045504
      %v241 = vsel %vm239, %v238, %v208
      %v245 = vsel %vm232, %v174, %v210
      %v247 = vsel %vm236, %v245, %v219
      %v249 = vsel %vm239, %v247, %v229
      %v251 = vld [vmem:[%s1] sm:$0xf]
      %vm252 = vcmask 293888
      %v254 = vsel %vm252, %v251, 0
      %v257 = vsel %vm232, %v231, 0
      %259 = vmatprep.subr.bf16.mxu0 0
      %260 = vmatpush1.bf16.msra.mxu0 %v241
      %261 = vmatprep.subr.bf16.mxu0 0
      %262 = vmatpush1.bf16.msra.mxu0 %v249
      %263 = vmatprep.subr.bf16.mxu0 0
      %264 = vmatpush1.bf16.msra.mxu0 %v257
      %265 = vmatprep.subr.bf16.mxu0 0
      %266 = vmatpush1.bf16.msra.mxu0 0
      %267 = vmatprep.subr.bf16.mxu0 0
      %268 = vmatpush1.bf16.msra.mxu0 0
      %269 = vmatprep.subr.bf16.mxu0 0
      %270 = vmatpush1.bf16.msra.mxu0 0
      %271 = vmatprep.subr.bf16.mxu0 0
      %272 = vmatpush1.bf16.msra.mxu0 0
      %273 = vmatprep.subr.bf16.mxu0 0
      %274 = vmatpush1.bf16.msra.mxu0 0
      %275 = vmatprep.subr.bf16.mxu0 0
      %276 = vmatpush1.bf16.msra.mxu0 0
      %277 = vmatprep.subr.bf16.mxu0 0
      %278 = vmatpush1.bf16.msra.mxu0 0
      %279 = vmatprep.subr.bf16.mxu0 0
      %280 = vmatpush1.bf16.msra.mxu0 0
      %281 = vmatprep.subr.bf16.mxu0 0
      %282 = vmatpush1.bf16.msra.mxu0 0
      %283 = vmatprep.subr.bf16.mxu0 0
      %284 = vmatpush1.bf16.msra.mxu0 0
      %285 = vmatprep.subr.bf16.mxu0 0
      %286 = vmatpush1.bf16.msra.mxu0 0
      %287 = vmatprep.subr.bf16.mxu0 0
      %288 = vmatpush1.bf16.msra.mxu0 0
      %289 = vmatprep.subr.bf16.mxu0 0
      %290 = vmatpush1.bf16.msra.mxu0 0
      %291 = vmatprep.mubr.bf16.mxu0 0
      %292 = vmatmul.mubr.bf16.gmra.mrb[0].mxu0 %v254
      %v293 = vpop.f32.mrb[0].mxu0
      %v294 = vadd.f32 0.0, %v293
      %v295 = vpop.f32.mrb[0].mxu0
      %v296 = vpop.f32.mrb[0].mxu0
      %v297 = vpop.f32.mrb[0].mxu0
      %298 = vdwg.mxu0
      %s299 = scalar_lea.vmem %s155, 12
      %v300 = vld [vmem:[%s299] sm:$0x3]
      %s301 = scalar_lea.vmem %s155, 14
      %v302 = vld [vmem:[%s301] sm:$0x3]
      %s303 = scalar_lea.vmem %s155, 16
      %v304 = vld [vmem:[%s303] sm:$0x3]
      %s305 = scalar_lea.vmem %s155, 18
      %v306 = vld [vmem:[%s305] sm:$0x3]
      %307 = vrot.lane.b32.xlu0 %v219, 127
      %v308 = vpop.permute.xlu0 %307
      %v310 = vcombine.low %v300, %v300
      %v312 = vunpack.c.l.s4 1983009808
      %v313 = vunpack.c.0.s8 %v312
      %v314 = vlaneseq
      %v315 = vshrl.u32 %v314, 7
      %v316 = vsub.s32 %v313, %v315
      %v317 = vrot.slane %v310, %v316
      %v318 = vcombine.low %v317, %v317
      %319 = vrot.lane.b32.xlu0 %v317, 127
      %v320 = vpop.permute.xlu0 %319
      %v323 = vunpack.c.l.s4 1983009808
      %v324 = vunpack.c.0.s8 %v323
      %v325 = vlaneseq
      %v326 = vshrl.u32 %v325, 7
      %v327 = vsub.s32 %v324, %v326
      %v328 = vrot.slane %v304, %v327
      %v329 = vcombine.low %v328, %v328
      %v331 = vcombine.low %v306, %v306
      %v333 = vunpack.c.l.s4 1983009808
      %v334 = vunpack.c.0.s8 %v333
      %v335 = vlaneseq
      %v336 = vshrl.u32 %v335, 7
      %v337 = vsub.s32 %v334, %v336
      %v338 = vrot.slane %v331, %v337
      %v339 = vcombine.low %v338, %v338
      %340 = vrot.lane.b32.xlu0 %v328, 127
      %v341 = vpop.permute.xlu0 %340
      %v344 = vsel %vm232, %v176, %v228
      %v346 = vsel %vm236, %v344, %v308
      %v348 = vsel %vm239, %v346, %v318
      %v352 = vsel %vm232, %v302, %v320
      %v354 = vsel %vm236, %v352, %v329
      %v356 = vsel %vm239, %v354, %v339
      %v359 = vsel %vm232, %v341, 0
      %361 = vmatprep.subr.bf16.mxu0 0
      %362 = vmatpush1.bf16.msra.mxu0 %v348
      %363 = vmatprep.subr.bf16.mxu0 0
      %364 = vmatpush1.bf16.msra.mxu0 %v356
      %365 = vmatprep.subr.bf16.mxu0 0
      %366 = vmatpush1.bf16.msra.mxu0 %v359
      %367 = vmatprep.subr.bf16.mxu0 0
      %368 = vmatpush1.bf16.msra.mxu0 0
      %369 = vmatprep.subr.bf16.mxu0 0
      %370 = vmatpush1.bf16.msra.mxu0 0
      %371 = vmatprep.subr.bf16.mxu0 0
      %372 = vmatpush1.bf16.msra.mxu0 0
      %373 = vmatprep.subr.bf16.mxu0 0
      %374 = vmatpush1.bf16.msra.mxu0 0
      %375 = vmatprep.subr.bf16.mxu0 0
      %376 = vmatpush1.bf16.msra.mxu0 0
      %377 = vmatprep.subr.bf16.mxu0 0
      %378 = vmatpush1.bf16.msra.mxu0 0
      %379 = vmatprep.subr.bf16.mxu0 0
      %380 = vmatpush1.bf16.msra.mxu0 0
      %381 = vmatprep.subr.bf16.mxu0 0
      %382 = vmatpush1.bf16.msra.mxu0 0
      %383 = vmatprep.subr.bf16.mxu0 0
      %384 = vmatpush1.bf16.msra.mxu0 0
      %385 = vmatprep.subr.bf16.mxu0 0
      %386 = vmatpush1.bf16.msra.mxu0 0
      %387 = vmatprep.subr.bf16.mxu0 0
      %388 = vmatpush1.bf16.msra.mxu0 0
      %389 = vmatprep.subr.bf16.mxu0 0
      %390 = vmatpush1.bf16.msra.mxu0 0
      %391 = vmatprep.subr.bf16.mxu0 0
      %392 = vmatpush1.bf16.msra.mxu0 0
      %393 = vmatprep.mubr.bf16.mxu0 0
      %394 = vmatmul.mubr.bf16.gmra.mrb[0].mxu0 %v254
      %v395 = vpop.f32.mrb[0].mxu0
      %v396 = vadd.f32 0.0, %v395
      %v397 = vpop.f32.mrb[0].mxu0
      %v398 = vpop.f32.mrb[0].mxu0
      %v399 = vpop.f32.mrb[0].mxu0
      %400 = vdwg.mxu0
      %s401 = scalar_lea.vmem %s155, 20
      %v402 = vld [vmem:[%s401] sm:$0x3]
      %s403 = scalar_lea.vmem %s155, 22
      %v404 = vld [vmem:[%s403] sm:$0x3]
      %s405 = scalar_lea.vmem %s155, 24
      %v406 = vld [vmem:[%s405] sm:$0x3]
      %s407 = scalar_lea.vmem %s155, 26
      %v408 = vld [vmem:[%s407] sm:$0x3]
      %409 = vrot.lane.b32.xlu0 %v329, 127
      %v410 = vpop.permute.xlu0 %409
      %v412 = vcombine.low %v402, %v402
      %v414 = vunpack.c.l.s4 1983009808
      %v415 = vunpack.c.0.s8 %v414
      %v416 = vlaneseq
      %v417 = vshrl.u32 %v416, 7
      %v418 = vsub.s32 %v415, %v417
      %v419 = vrot.slane %v412, %v418
      %v420 = vcombine.low %v419, %v419
      %421 = vrot.lane.b32.xlu0 %v419, 127
      %v422 = vpop.permute.xlu0 %421
      %v425 = vunpack.c.l.s4 1983009808
      %v426 = vunpack.c.0.s8 %v425
      %v427 = vlaneseq
      %v428 = vshrl.u32 %v427, 7
      %v429 = vsub.s32 %v426, %v428
      %v430 = vrot.slane %v406, %v429
      %v431 = vcombine.low %v430, %v430
      %v433 = vcombine.low %v408, %v408
      %v435 = vunpack.c.l.s4 1983009808
      %v436 = vunpack.c.0.s8 %v435
      %v437 = vlaneseq
      %v438 = vshrl.u32 %v437, 7
      %v439 = vsub.s32 %v436, %v438
      %v440 = vrot.slane %v433, %v439
      %v441 = vcombine.low %v440, %v440
      %442 = vrot.lane.b32.xlu0 %v430, 127
      %v443 = vpop.permute.xlu0 %442
      %v446 = vsel %vm232, %v304, %v338
      %v448 = vsel %vm236, %v446, %v410
      %v450 = vsel %vm239, %v448, %v420
      %v454 = vsel %vm232, %v404, %v422
      %v456 = vsel %vm236, %v454, %v431
      %v458 = vsel %vm239, %v456, %v441
      %v461 = vsel %vm232, %v443, 0
      %463 = vmatprep.subr.bf16.mxu0 0
      %464 = vmatpush1.bf16.msra.mxu0 %v450
      %465 = vmatprep.subr.bf16.mxu0 0
      %466 = vmatpush1.bf16.msra.mxu0 %v458
      %467 = vmatprep.subr.bf16.mxu0 0
      %468 = vmatpush1.bf16.msra.mxu0 %v461
      %469 = vmatprep.subr.bf16.mxu0 0
      %470 = vmatpush1.bf16.msra.mxu0 0
      %471 = vmatprep.subr.bf16.mxu0 0
      %472 = vmatpush1.bf16.msra.mxu0 0
      %473 = vmatprep.subr.bf16.mxu0 0
      %474 = vmatpush1.bf16.msra.mxu0 0
      %475 = vmatprep.subr.bf16.mxu0 0
      %476 = vmatpush1.bf16.msra.mxu0 0
      %477 = vmatprep.subr.bf16.mxu0 0
      %478 = vmatpush1.bf16.msra.mxu0 0
      %479 = vmatprep.subr.bf16.mxu0 0
      %480 = vmatpush1.bf16.msra.mxu0 0
      %481 = vmatprep.subr.bf16.mxu0 0
      %482 = vmatpush1.bf16.msra.mxu0 0
      %483 = vmatprep.subr.bf16.mxu0 0
      %484 = vmatpush1.bf16.msra.mxu0 0
      %485 = vmatprep.subr.bf16.mxu0 0
      %486 = vmatpush1.bf16.msra.mxu0 0
      %487 = vmatprep.subr.bf16.mxu0 0
      %488 = vmatpush1.bf16.msra.mxu0 0
      %489 = vmatprep.subr.bf16.mxu0 0
      %490 = vmatpush1.bf16.msra.mxu0 0
      %491 = vmatprep.subr.bf16.mxu0 0
      %492 = vmatpush1.bf16.msra.mxu0 0
      %493 = vmatprep.subr.bf16.mxu0 0
      %494 = vmatpush1.bf16.msra.mxu0 0
      %495 = vmatprep.mubr.bf16.mxu0 0
      %496 = vmatmul.mubr.bf16.gmra.mrb[0].mxu0 %v254
      %v497 = vpop.f32.mrb[0].mxu0
      %v498 = vadd.f32 0.0, %v497
      %v499 = vpop.f32.mrb[0].mxu0
      %v500 = vpop.f32.mrb[0].mxu0
      %v501 = vpop.f32.mrb[0].mxu0
      %502 = vdwg.mxu0
      %s503 = scalar_lea.vmem %s155, 28
      %v504 = vld [vmem:[%s503] sm:$0x3]
      %s505 = scalar_lea.vmem %s155, 30
      %v506 = vld [vmem:[%s505] sm:$0x3]
      %s507 = scalar_lea.vmem %s155, 32
      %v508 = vld [vmem:[%s507] sm:$0x3]
      %s509 = scalar_lea.vmem %s155, 34
      %v510 = vld [vmem:[%s509] sm:$0x3]
      %511 = vrot.lane.b32.xlu0 %v431, 127
      %v512 = vpop.permute.xlu0 %511
      %v514 = vcombine.low %v504, %v504
      %v516 = vunpack.c.l.s4 1983009808
      %v517 = vunpack.c.0.s8 %v516
      %v518 = vlaneseq
      %v519 = vshrl.u32 %v518, 7
      %v520 = vsub.s32 %v517, %v519
      %v521 = vrot.slane %v514, %v520
      %v522 = vcombine.low %v521, %v521
      %523 = vrot.lane.b32.xlu0 %v521, 127
      %v524 = vpop.permute.xlu0 %523
      %v527 = vunpack.c.l.s4 1983009808
      %v528 = vunpack.c.0.s8 %v527
      %v529 = vlaneseq
      %v530 = vshrl.u32 %v529, 7
      %v531 = vsub.s32 %v528, %v530
      %v532 = vrot.slane %v508, %v531
      %v533 = vcombine.low %v532, %v532
      %v535 = vcombine.low %v510, %v510
      %v537 = vunpack.c.l.s4 1983009808
      %v538 = vunpack.c.0.s8 %v537
      %v539 = vlaneseq
      %v540 = vshrl.u32 %v539, 7
      %v541 = vsub.s32 %v538, %v540
      %v542 = vrot.slane %v535, %v541
      %v543 = vcombine.low %v542, %v542
      %544 = vrot.lane.b32.xlu0 %v532, 127
      %v545 = vpop.permute.xlu0 %544
      %v548 = vsel %vm232, %v406, %v440
      %v550 = vsel %vm236, %v548, %v512
      %v552 = vsel %vm239, %v550, %v522
      %v556 = vsel %vm232, %v506, %v524
      %v558 = vsel %vm236, %v556, %v533
      %v560 = vsel %vm239, %v558, %v543
      %v563 = vsel %vm232, %v545, 0
      %565 = vmatprep.subr.bf16.mxu0 0
      %566 = vmatpush1.bf16.msra.mxu0 %v552
      %567 = vmatprep.subr.bf16.mxu0 0
      %568 = vmatpush1.bf16.msra.mxu0 %v560
      %569 = vmatprep.subr.bf16.mxu0 0
      %570 = vmatpush1.bf16.msra.mxu0 %v563
      %571 = vmatprep.subr.bf16.mxu0 0
      %572 = vmatpush1.bf16.msra.mxu0 0
      %573 = vmatprep.subr.bf16.mxu0 0
      %574 = vmatpush1.bf16.msra.mxu0 0
      %575 = vmatprep.subr.bf16.mxu0 0
      %576 = vmatpush1.bf16.msra.mxu0 0
      %577 = vmatprep.subr.bf16.mxu0 0
      %578 = vmatpush1.bf16.msra.mxu0 0
      %579 = vmatprep.subr.bf16.mxu0 0
      %580 = vmatpush1.bf16.msra.mxu0 0
      %581 = vmatprep.subr.bf16.mxu0 0
      %582 = vmatpush1.bf16.msra.mxu0 0
      %583 = vmatprep.subr.bf16.mxu0 0
      %584 = vmatpush1.bf16.msra.mxu0 0
      %585 = vmatprep.subr.bf16.mxu0 0
      %586 = vmatpush1.bf16.msra.mxu0 0
      %587 = vmatprep.subr.bf16.mxu0 0
      %588 = vmatpush1.bf16.msra.mxu0 0
      %589 = vmatprep.subr.bf16.mxu0 0
      %590 = vmatpush1.bf16.msra.mxu0 0
      %591 = vmatprep.subr.bf16.mxu0 0
      %592 = vmatpush1.bf16.msra.mxu0 0
      %593 = vmatprep.subr.bf16.mxu0 0
      %594 = vmatpush1.bf16.msra.mxu0 0
      %595 = vmatprep.subr.bf16.mxu0 0
      %596 = vmatpush1.bf16.msra.mxu0 0
      %597 = vmatprep.mubr.bf16.mxu0 0
      %598 = vmatmul.mubr.bf16.gmra.mrb[0].mxu0 %v254
      %v599 = vpop.f32.mrb[0].mxu0
      %v600 = vadd.f32 0.0, %v599
      %v601 = vpop.f32.mrb[0].mxu0
      %v602 = vpop.f32.mrb[0].mxu0
      %v603 = vpop.f32.mrb[0].mxu0
      %604 = vdwg.mxu0
      %s605 = scalar_lea.vmem %s155, 36
      %v606 = vld [vmem:[%s605] sm:$0x3]
      %s607 = scalar_lea.vmem %s155, 38
      %v608 = vld [vmem:[%s607] sm:$0x3]
      %s609 = scalar_lea.vmem %s155, 40
      %v610 = vld [vmem:[%s609] sm:$0x3]
      %s611 = scalar_lea.vmem %s155, 42
      %v612 = vld [vmem:[%s611] sm:$0x3]
      %613 = vrot.lane.b32.xlu0 %v533, 127
      %v614 = vpop.permute.xlu0 %613
      %v616 = vcombine.low %v606, %v606
      %v618 = vunpack.c.l.s4 1983009808
      %v619 = vunpack.c.0.s8 %v618
      %v620 = vlaneseq
      %v621 = vshrl.u32 %v620, 7
      %v622 = vsub.s32 %v619, %v621
      %v623 = vrot.slane %v616, %v622
      %v624 = vcombine.low %v623, %v623
      %625 = vrot.lane.b32.xlu0 %v623, 127
      %v626 = vpop.permute.xlu0 %625
      %v629 = vunpack.c.l.s4 1983009808
      %v630 = vunpack.c.0.s8 %v629
      %v631 = vlaneseq
      %v632 = vshrl.u32 %v631, 7
      %v633 = vsub.s32 %v630, %v632
      %v634 = vrot.slane %v610, %v633
      %v635 = vcombine.low %v634, %v634
      %v637 = vcombine.low %v612, %v612
      %v639 = vunpack.c.l.s4 1983009808
      %v640 = vunpack.c.0.s8 %v639
      %v641 = vlaneseq
      %v642 = vshrl.u32 %v641, 7
      %v643 = vsub.s32 %v640, %v642
      %v644 = vrot.slane %v637, %v643
      %v645 = vcombine.low %v644, %v644
      %646 = vrot.lane.b32.xlu0 %v634, 127
      %v647 = vpop.permute.xlu0 %646
      %v650 = vsel %vm232, %v508, %v542
      %v652 = vsel %vm236, %v650, %v614
      %v654 = vsel %vm239, %v652, %v624
      %v658 = vsel %vm232, %v608, %v626
      %v660 = vsel %vm236, %v658, %v635
      %v662 = vsel %vm239, %v660, %v645
      %v665 = vsel %vm232, %v647, 0
      %667 = vmatprep.subr.bf16.mxu0 0
      %668 = vmatpush1.bf16.msra.mxu0 %v654
      %669 = vmatprep.subr.bf16.mxu0 0
      %670 = vmatpush1.bf16.msra.mxu0 %v662
      %671 = vmatprep.subr.bf16.mxu0 0
      %672 = vmatpush1.bf16.msra.mxu0 %v665
      %673 = vmatprep.subr.bf16.mxu0 0
      %674 = vmatpush1.bf16.msra.mxu0 0
      %675 = vmatprep.subr.bf16.mxu0 0
      %676 = vmatpush1.bf16.msra.mxu0 0
      %677 = vmatprep.subr.bf16.mxu0 0
      %678 = vmatpush1.bf16.msra.mxu0 0
      %679 = vmatprep.subr.bf16.mxu0 0
      %680 = vmatpush1.bf16.msra.mxu0 0
      %681 = vmatprep.subr.bf16.mxu0 0
      %682 = vmatpush1.bf16.msra.mxu0 0
      %683 = vmatprep.subr.bf16.mxu0 0
      %684 = vmatpush1.bf16.msra.mxu0 0
      %685 = vmatprep.subr.bf16.mxu0 0
      %686 = vmatpush1.bf16.msra.mxu0 0
      %687 = vmatprep.subr.bf16.mxu0 0
      %688 = vmatpush1.bf16.msra.mxu0 0
      %689 = vmatprep.subr.bf16.mxu0 0
      %690 = vmatpush1.bf16.msra.mxu0 0
      %691 = vmatprep.subr.bf16.mxu0 0
      %692 = vmatpush1.bf16.msra.mxu0 0
      %693 = vmatprep.subr.bf16.mxu0 0
      %694 = vmatpush1.bf16.msra.mxu0 0
      %695 = vmatprep.subr.bf16.mxu0 0
      %696 = vmatpush1.bf16.msra.mxu0 0
      %697 = vmatprep.subr.bf16.mxu0 0
      %698 = vmatpush1.bf16.msra.mxu0 0
      %699 = vmatprep.mubr.bf16.mxu0 0
      %700 = vmatmul.mubr.bf16.gmra.mrb[0].mxu0 %v254
      %v701 = vpop.f32.mrb[0].mxu0
      %v702 = vadd.f32 0.0, %v701
      %v703 = vpop.f32.mrb[0].mxu0
      %v704 = vpop.f32.mrb[0].mxu0
      %v705 = vpop.f32.mrb[0].mxu0
      %706 = vdwg.mxu0
      %s707 = scalar_lea.vmem %s155, 44
      %v708 = vld [vmem:[%s707] sm:$0x3]
      %s709 = scalar_lea.vmem %s155, 46
      %v710 = vld [vmem:[%s709] sm:$0x3]
      %s711 = scalar_lea.vmem %s155, 48
      %v712 = vld [vmem:[%s711] sm:$0x3]
      %s713 = scalar_lea.vmem %s155, 50
      %v714 = vld [vmem:[%s713] sm:$0x3]
      %715 = vrot.lane.b32.xlu0 %v635, 127
      %v716 = vpop.permute.xlu0 %715
      %v718 = vcombine.low %v708, %v708
      %v720 = vunpack.c.l.s4 1983009808
      %v721 = vunpack.c.0.s8 %v720
      %v722 = vlaneseq
      %v723 = vshrl.u32 %v722, 7
      %v724 = vsub.s32 %v721, %v723
      %v725 = vrot.slane %v718, %v724
      %v726 = vcombine.low %v725, %v725
      %727 = vrot.lane.b32.xlu0 %v725, 127
      %v728 = vpop.permute.xlu0 %727
      %v731 = vunpack.c.l.s4 1983009808
      %v732 = vunpack.c.0.s8 %v731
      %v733 = vlaneseq
      %v734 = vshrl.u32 %v733, 7
      %v735 = vsub.s32 %v732, %v734
      %v736 = vrot.slane %v712, %v735
      %v737 = vcombine.low %v736, %v736
      %v739 = vcombine.low %v714, %v714
      %v741 = vunpack.c.l.s4 1983009808
      %v742 = vunpack.c.0.s8 %v741
      %v743 = vlaneseq
      %v744 = vshrl.u32 %v743, 7
      %v745 = vsub.s32 %v742, %v744
      %v746 = vrot.slane %v739, %v745
      %v747 = vcombine.low %v746, %v746
      %748 = vrot.lane.b32.xlu0 %v736, 127
      %v749 = vpop.permute.xlu0 %748
      %v752 = vsel %vm232, %v610, %v644
      %v754 = vsel %vm236, %v752, %v716
      %v756 = vsel %vm239, %v754, %v726
      %v760 = vsel %vm232, %v710, %v728
      %v762 = vsel %vm236, %v760, %v737
      %v764 = vsel %vm239, %v762, %v747
      %v767 = vsel %vm232, %v749, 0
      %769 = vmatprep.subr.bf16.mxu0 0
      %770 = vmatpush1.bf16.msra.mxu0 %v756
      %771 = vmatprep.subr.bf16.mxu0 0
      %772 = vmatpush1.bf16.msra.mxu0 %v764
      %773 = vmatprep.subr.bf16.mxu0 0
      %774 = vmatpush1.bf16.msra.mxu0 %v767
      %775 = vmatprep.subr.bf16.mxu0 0
      %776 = vmatpush1.bf16.msra.mxu0 0
      %777 = vmatprep.subr.bf16.mxu0 0
      %778 = vmatpush1.bf16.msra.mxu0 0
      %779 = vmatprep.subr.bf16.mxu0 0
      %780 = vmatpush1.bf16.msra.mxu0 0
      %781 = vmatprep.subr.bf16.mxu0 0
      %782 = vmatpush1.bf16.msra.mxu0 0
      %783 = vmatprep.subr.bf16.mxu0 0
      %784 = vmatpush1.bf16.msra.mxu0 0
      %785 = vmatprep.subr.bf16.mxu0 0
      %786 = vmatpush1.bf16.msra.mxu0 0
      %787 = vmatprep.subr.bf16.mxu0 0
      %788 = vmatpush1.bf16.msra.mxu0 0
      %789 = vmatprep.subr.bf16.mxu0 0
      %790 = vmatpush1.bf16.msra.mxu0 0
      %791 = vmatprep.subr.bf16.mxu0 0
      %792 = vmatpush1.bf16.msra.mxu0 0
      %793 = vmatprep.subr.bf16.mxu0 0
      %794 = vmatpush1.bf16.msra.mxu0 0
      %795 = vmatprep.subr.bf16.mxu0 0
      %796 = vmatpush1.bf16.msra.mxu0 0
      %797 = vmatprep.subr.bf16.mxu0 0
      %798 = vmatpush1.bf16.msra.mxu0 0
      %799 = vmatprep.subr.bf16.mxu0 0
      %800 = vmatpush1.bf16.msra.mxu0 0
      %801 = vmatprep.mubr.bf16.mxu0 0
      %802 = vmatmul.mubr.bf16.gmra.mrb[0].mxu0 %v254
      %v803 = vpop.f32.mrb[0].mxu0
      %v804 = vadd.f32 0.0, %v803
      %v805 = vpop.f32.mrb[0].mxu0
      %v806 = vpop.f32.mrb[0].mxu0
      %v807 = vpop.f32.mrb[0].mxu0
      %808 = vdwg.mxu0
      %s809 = scalar_lea.vmem %s155, 52
      %v810 = vld [vmem:[%s809] sm:$0x3]
      %s811 = scalar_lea.vmem %s155, 54
      %v812 = vld [vmem:[%s811] sm:$0x3]
      %s813 = scalar_lea.vmem %s155, 56
      %v814 = vld [vmem:[%s813] sm:$0x3]
      %s815 = scalar_lea.vmem %s155, 58
      %v816 = vld [vmem:[%s815] sm:$0x3]
      %817 = vrot.lane.b32.xlu0 %v737, 127
      %v818 = vpop.permute.xlu0 %817
      %v820 = vcombine.low %v810, %v810
      %v822 = vunpack.c.l.s4 1983009808
      %v823 = vunpack.c.0.s8 %v822
      %v824 = vlaneseq
      %v825 = vshrl.u32 %v824, 7
      %v826 = vsub.s32 %v823, %v825
      %v827 = vrot.slane %v820, %v826
      %v828 = vcombine.low %v827, %v827
      %829 = vrot.lane.b32.xlu0 %v827, 127
      %v830 = vpop.permute.xlu0 %829
      %v833 = vunpack.c.l.s4 1983009808
      %v834 = vunpack.c.0.s8 %v833
      %v835 = vlaneseq
      %v836 = vshrl.u32 %v835, 7
      %v837 = vsub.s32 %v834, %v836
      %v838 = vrot.slane %v814, %v837
      %v839 = vcombine.low %v838, %v838
      %v841 = vcombine.low %v816, %v816
      %v843 = vunpack.c.l.s4 1983009808
      %v844 = vunpack.c.0.s8 %v843
      %v845 = vlaneseq
      %v846 = vshrl.u32 %v845, 7
      %v847 = vsub.s32 %v844, %v846
      %v848 = vrot.slane %v841, %v847
      %v849 = vcombine.low %v848, %v848
      %850 = vrot.lane.b32.xlu0 %v838, 127
      %v851 = vpop.permute.xlu0 %850
      %v854 = vsel %vm232, %v712, %v746
      %v856 = vsel %vm236, %v854, %v818
      %v858 = vsel %vm239, %v856, %v828
      %v862 = vsel %vm232, %v812, %v830
      %v864 = vsel %vm236, %v862, %v839
      %v866 = vsel %vm239, %v864, %v849
      %v869 = vsel %vm232, %v851, 0
      %871 = vmatprep.subr.bf16.mxu0 0
      %872 = vmatpush1.bf16.msra.mxu0 %v858
      %873 = vmatprep.subr.bf16.mxu0 0
      %874 = vmatpush1.bf16.msra.mxu0 %v866
      %875 = vmatprep.subr.bf16.mxu0 0
      %876 = vmatpush1.bf16.msra.mxu0 %v869
      %877 = vmatprep.subr.bf16.mxu0 0
      %878 = vmatpush1.bf16.msra.mxu0 0
      %879 = vmatprep.subr.bf16.mxu0 0
      %880 = vmatpush1.bf16.msra.mxu0 0
      %881 = vmatprep.subr.bf16.mxu0 0
      %882 = vmatpush1.bf16.msra.mxu0 0
      %883 = vmatprep.subr.bf16.mxu0 0
      %884 = vmatpush1.bf16.msra.mxu0 0
      %885 = vmatprep.subr.bf16.mxu0 0
      %886 = vmatpush1.bf16.msra.mxu0 0
      %887 = vmatprep.subr.bf16.mxu0 0
      %888 = vmatpush1.bf16.msra.mxu0 0
      %889 = vmatprep.subr.bf16.mxu0 0
      %890 = vmatpush1.bf16.msra.mxu0 0
      %891 = vmatprep.subr.bf16.mxu0 0
      %892 = vmatpush1.bf16.msra.mxu0 0
      %893 = vmatprep.subr.bf16.mxu0 0
      %894 = vmatpush1.bf16.msra.mxu0 0
      %895 = vmatprep.subr.bf16.mxu0 0
      %896 = vmatpush1.bf16.msra.mxu0 0
      %897 = vmatprep.subr.bf16.mxu0 0
      %898 = vmatpush1.bf16.msra.mxu0 0
      %899 = vmatprep.subr.bf16.mxu0 0
      %900 = vmatpush1.bf16.msra.mxu0 0
      %901 = vmatprep.subr.bf16.mxu0 0
      %902 = vmatpush1.bf16.msra.mxu0 0
      %903 = vmatprep.mubr.bf16.mxu0 0
      %904 = vmatmul.mubr.bf16.gmra.mrb[0].mxu0 %v254
      %v905 = vpop.f32.mrb[0].mxu0
      %v906 = vadd.f32 0.0, %v905
      %v907 = vpop.f32.mrb[0].mxu0
      %v908 = vpop.f32.mrb[0].mxu0
      %v909 = vpop.f32.mrb[0].mxu0
      %910 = vdwg.mxu0
      %s911 = scalar_lea.vmem %s155, 60
      %v912 = vld [vmem:[%s911] sm:$0x3]
      %s913 = scalar_lea.vmem %s155, 62
      %v914 = vld [vmem:[%s913] sm:$0x3]
      %s915 = scalar_lea.vmem %s155, 64
      %v916 = vld [vmem:[%s915] sm:$0x3]
      %s917 = scalar_lea.vmem %s155, 66
      %v918 = vld [vmem:[%s917] sm:$0x3]
      %919 = vrot.lane.b32.xlu0 %v839, 127
      %v920 = vpop.permute.xlu0 %919
      %v922 = vcombine.low %v912, %v912
      %v924 = vunpack.c.l.s4 1983009808
      %v925 = vunpack.c.0.s8 %v924
      %v926 = vlaneseq
      %v927 = vshrl.u32 %v926, 7
      %v928 = vsub.s32 %v925, %v927
      %v929 = vrot.slane %v922, %v928
      %v930 = vcombine.low %v929, %v929
      %931 = vrot.lane.b32.xlu0 %v929, 127
      %v932 = vpop.permute.xlu0 %931
      %v935 = vunpack.c.l.s4 1983009808
      %v936 = vunpack.c.0.s8 %v935
      %v937 = vlaneseq
      %v938 = vshrl.u32 %v937, 7
      %v939 = vsub.s32 %v936, %v938
      %v940 = vrot.slane %v916, %v939
      %v941 = vcombine.low %v940, %v940
      %v943 = vcombine.low %v918, %v918
      %v945 = vunpack.c.l.s4 1983009808
      %v946 = vunpack.c.0.s8 %v945
      %v947 = vlaneseq
      %v948 = vshrl.u32 %v947, 7
      %v949 = vsub.s32 %v946, %v948
      %v950 = vrot.slane %v943, %v949
      %v951 = vcombine.low %v950, %v950
      %952 = vrot.lane.b32.xlu0 %v940, 127
      %v953 = vpop.permute.xlu0 %952
      %v956 = vsel %vm232, %v814, %v848
      %v958 = vsel %vm236, %v956, %v920
      %v960 = vsel %vm239, %v958, %v930
      %v964 = vsel %vm232, %v914, %v932
      %v966 = vsel %vm236, %v964, %v941
      %v968 = vsel %vm239, %v966, %v951
      %v971 = vsel %vm232, %v953, 0
      %973 = vmatprep.subr.bf16.mxu0 0
      %974 = vmatpush1.bf16.msra.mxu0 %v960
      %975 = vmatprep.subr.bf16.mxu0 0
      %976 = vmatpush1.bf16.msra.mxu0 %v968
      %977 = vmatprep.subr.bf16.mxu0 0
      %978 = vmatpush1.bf16.msra.mxu0 %v971
      %979 = vmatprep.subr.bf16.mxu0 0
      %980 = vmatpush1.bf16.msra.mxu0 0
      %981 = vmatprep.subr.bf16.mxu0 0
      %982 = vmatpush1.bf16.msra.mxu0 0
      %983 = vmatprep.subr.bf16.mxu0 0
      %984 = vmatpush1.bf16.msra.mxu0 0
      %985 = vmatprep.subr.bf16.mxu0 0
      %986 = vmatpush1.bf16.msra.mxu0 0
      %987 = vmatprep.subr.bf16.mxu0 0
      %988 = vmatpush1.bf16.msra.mxu0 0
      %989 = vmatprep.subr.bf16.mxu0 0
      %990 = vmatpush1.bf16.msra.mxu0 0
      %991 = vmatprep.subr.bf16.mxu0 0
      %992 = vmatpush1.bf16.msra.mxu0 0
      %993 = vmatprep.subr.bf16.mxu0 0
      %994 = vmatpush1.bf16.msra.mxu0 0
      %995 = vmatprep.subr.bf16.mxu0 0
      %996 = vmatpush1.bf16.msra.mxu0 0
      %997 = vmatprep.subr.bf16.mxu0 0
      %998 = vmatpush1.bf16.msra.mxu0 0
      %999 = vmatprep.subr.bf16.mxu0 0
      %1000 = vmatpush1.bf16.msra.mxu0 0
      %1001 = vmatprep.subr.bf16.mxu0 0
      %1002 = vmatpush1.bf16.msra.mxu0 0
      %1003 = vmatprep.subr.bf16.mxu0 0
      %1004 = vmatpush1.bf16.msra.mxu0 0
      %1005 = vmatprep.mubr.bf16.mxu0 0
      %1006 = vmatmul.mubr.bf16.gmra.mrb[0].mxu0 %v254
      %v1007 = vpop.f32.mrb[0].mxu0
      %v1008 = vadd.f32 0.0, %v1007
      %v1009 = vpop.f32.mrb[0].mxu0
      %v1010 = vpop.f32.mrb[0].mxu0
      %v1011 = vpop.f32.mrb[0].mxu0
      %1012 = vdwg.mxu0
      %1014 = vrot.lane.b32.xlu0 %v396, 8
      %v1015 = vpop.permute.xlu0 %1014
      %1018 = vrot.lane.b32.xlu0 %v498, 16
      %v1019 = vpop.permute.xlu0 %1018
      %1022 = vrot.lane.b32.xlu0 %v600, 24
      %v1023 = vpop.permute.xlu0 %1022
      %1026 = vrot.lane.b32.xlu0 %v702, 32
      %v1027 = vpop.permute.xlu0 %1026
      %1030 = vrot.lane.b32.xlu0 %v804, 40
      %v1031 = vpop.permute.xlu0 %1030
      %1034 = vrot.lane.b32.xlu0 %v906, 48
      %v1035 = vpop.permute.xlu0 %1034
      %1038 = vrot.lane.b32.xlu0 %v1008, 56
      %v1039 = vpop.permute.xlu0 %1038
      %vm1041 = vcmask 64512
      %v1042 = vsel %vm1041, %v294, %v1015
      %vm1043 = vcmask 130048
      %v1044 = vsel %vm1043, %v1042, %v1019
      %vm1045 = vcmask 195584
      %v1046 = vsel %vm1045, %v1044, %v1023
      %vm1047 = vcmask 261120
      %v1048 = vsel %vm1047, %v1046, %v1027
      %vm1049 = vcmask 326656
      %v1050 = vsel %vm1049, %v1048, %v1031
      %vm1051 = vcmask 392192
      %v1052 = vsel %vm1051, %v1050, %v1035
      %vm1053 = vcmask 457728
      %v1054 = vsel %vm1053, %v1052, %v1039
      %v1055 = vld [vmem:[%s160] sm:$0xff]
      %vm1056 = vcmask 523264
      %v1057 = vsel %vm1056, %v1054, 0.0
      %1058 = vadd.xlane.f32.xlu0 %v1057
      %v1059 = vpop.xlane.xlu0 %1058
      %v1060 = vadd.f32 %v1055, %v1059
      %vm1061 = vcmask 7168
      %1062 = vst.msk [vmem:[%s160] sm:$0xff] %vm1061, %v1060
      %v1063 = vld [vmem:[%s160] sm:$0xff]
      %v1064 = vmul.f32 %v1054, %v1054
      %v1065 = vsel %vm1056, %v1064, 0.0
      %1066 = vadd.xlane.f32.xlu0 %v1065
      %v1067 = vpop.xlane.xlu0 %1066
      %v1068 = vadd.f32 %v1063, %v1067
      %vm1069 = vcmask 15368
      %1070 = vst.msk [vmem:[%s160] sm:$0xff] %vm1069, %v1068
      %p1071 = scmp.lt.s32.totalorder %s17, 1
      %s1072 = scalar_select %p1071, %s17, 1
      %s1073 = smul.addr %s1072, 8
      %s1074 = scalar_lea.vmem %s2, %s1073
      // Predicated region
      $region33: #{tpu_custom_call.1} parent=27 // pred_check
        %p1075 = pneg %p92
      $region34: #{tpu_custom_call.1} parent=27 // pred_check_branch
        %1077 = sbr.rel (%p1075) target = $region36
      $region35: #{tpu_custom_call.1} parent=27 // pred_region
        _
      $region36: #{tpu_custom_call.1} parent=27 // pred_fallthru
        _
    $region28: #{tpu_custom_call.1} parent=5 // pred_fallthru
      _
    %p1078 = scmp.le.s32.totalorder 2, %s8
    // Predicated region
    $region37: #{tpu_custom_call.1} parent=5 // pred_check
      %p1079 = pneg %p1078
    $region38: #{tpu_custom_call.1} parent=5 // pred_check_branch
      %1081 = sbr.rel (%p1079) target = $region40
    $region39: #{tpu_custom_call.1} parent=5 // pred_region
      %s1082 = ssub.s32 %s8, 2
      // Predicated region
      $region41: #{tpu_custom_call.1} parent=39 // pred_check
        %p1083 = pneg %p98
      $region42: #{tpu_custom_call.1} parent=39 // pred_check_branch
        %1085 = sbr.rel (%p1083) target = $region44
      $region43: #{tpu_custom_call.1} parent=39 // pred_region
        %p1086 = scmp.lt.s32.totalorder %s19, 1
        %s1087 = scalar_select %p1086, %s19, 1
        %s1088 = smul.addr %s1087, 8
        %s1089 = scalar_lea.vmem %s2, %s1088
      $region44: #{tpu_custom_call.1} parent=39 // pred_fallthru
        _
    $region40: #{tpu_custom_call.1} parent=5 // pred_fallthru
      _
  $region6: #{tpu_custom_call.1} parent=0 // loop_footer
    %s12 = sadd.s32 1, %s8
  $region7: #{tpu_custom_call.1} parent=0 // loop_footer_branch
    %7 = sbr.rel target = $region3
  $region8: #{tpu_custom_call.1} parent=0 // loop_exit
    _

</llo_original>
